<compile_context>
chip_gen: v7x
topology: tpu7x:2x2x1
jax: 0.10.0
libtpu: 0.0.40
codegen_flags: <defaults>
</compile_context>

<pallas_src>
import functools

import jax
import jax.numpy as jnp
from jax import lax
from jax.experimental import pallas as pl
from jax.experimental.pallas import tpu as pltpu

_EPS = 1e-6  # nn.PairwiseDistance default eps


def _round_up(x: int, m: int) -> int:
    return (x + m - 1) // m * m


def _koleo_kernel(q_ref, k_ref, out_ref, m_sc, dot_sc, nnorm_sc, nsum_sc, *,
                  n, d, tile, n_pad, use_bf16_dots):
    i = pl.program_id(0)      # row block
    j = pl.program_id(1)      # col block (reduction axis, last)
    nj = pl.num_programs(1)

    @pl.when(j == 0)
    def _():
        m_sc[...] = jnp.full_like(m_sc, -jnp.inf)
        dot_sc[...] = jnp.zeros_like(dot_sc)
        nnorm_sc[...] = jnp.zeros_like(nnorm_sc)
        nsum_sc[...] = jnp.zeros_like(nsum_sc)

    q = q_ref[...]            # (tile, d_pad) f32
    k = k_ref[...]            # (tile, d_pad) f32

    if use_bf16_dots:
        qd = q.astype(jnp.bfloat16)
        kd = k.astype(jnp.bfloat16)
    else:
        qd, kd = q, k

    # NT contraction on the MXU — no explicit transpose through the XLU.
    dots_raw = lax.dot_general(
        qd, kd, dimension_numbers=(((1,), (1,)), ((), ())),
        preferred_element_type=jnp.float32)                      # (tile, tile)

    row_g = i * tile + lax.broadcasted_iota(jnp.int32, (tile, tile), 0)
    col_l = lax.broadcasted_iota(jnp.int32, (tile, tile), 1)
    col_g = j * tile + col_l

    # Selection values: diagonal -> -1 (matches fill_(-1)), padded cols -> -inf.
    dots_sel = jnp.where(row_g == col_g, jnp.float32(-1.0), dots_raw)
    if n_pad != n:
        dots_sel = jnp.where(col_g >= n, -jnp.inf, dots_sel)

    # First-occurrence argmax within this tile (min local index among maxima).
    tile_max = jnp.max(dots_sel, axis=1, keepdims=True)           # (tile, 1)
    cand = jnp.where(dots_sel == tile_max, col_l, jnp.int32(tile))
    tile_arg = jnp.min(cand, axis=1, keepdims=True)               # (tile, 1)
    onehot = (col_l == tile_arg).astype(jnp.float32)              # (tile, tile)

    # Neighbor statistics needed for the algebraic distance: gather the
    # winner's ||x_I||^2 and sum(x_I) with a single tiny (tile,tile)x(tile,2)
    # MXU matmul instead of two separate ones.
    k_norm = jnp.sum(k * k, axis=1, keepdims=True)                # (tile, 1)
    k_sum = jnp.sum(k, axis=1, keepdims=True)                     # (tile, 1)
    stats = jnp.concatenate([k_norm, k_sum], axis=1)              # (tile, 2)
    gathered = jnp.dot(onehot, stats, preferred_element_type=jnp.float32)
    tile_nnorm = gathered[:, 0:1]
    tile_nsum = gathered[:, 1:2]

    # True <x_i, x_I> (not the masked selection value): needed when the
    # "neighbor" is the row itself (all off-diagonal dots < -1).
    tile_dot = jnp.sum(onehot * dots_raw, axis=1, keepdims=True)

    # Running update; strict ">" keeps the earlier (smaller-index) winner on ties.
    better = tile_max > m_sc[...]
    dot_sc[...] = jnp.where(better, tile_dot, dot_sc[...])
    nnorm_sc[...] = jnp.where(better, tile_nnorm, nnorm_sc[...])
    nsum_sc[...] = jnp.where(better, tile_nsum, nsum_sc[...])
    m_sc[...] = jnp.where(better, tile_max, m_sc[...])

    @pl.when(j == nj - 1)
    def _():
        q_norm = jnp.sum(q * q, axis=1, keepdims=True)            # (tile, 1)
        q_sum = jnp.sum(q, axis=1, keepdims=True)
        eps = jnp.float32(_EPS)
        # ||x - x_I + eps||^2 with exact eps cross-term; D = original feature dim.
        sumsq = (q_norm + nnorm_sc[...] - 2.0 * dot_sc[...]
                 + 2.0 * eps * (q_sum - nsum_sc[...])
                 + jnp.float32(d) * eps * eps)
        sumsq = jnp.maximum(sumsq, jnp.float32(1e-30))
        # log(n * dist) = log(n) + 0.5 * log(sumsq)  (no sqrt needed).
        log_term = jnp.log(jnp.float32(n)) + 0.5 * jnp.log(sumsq)
        if n_pad != n:
            rows = i * tile + lax.broadcasted_iota(jnp.int32, (tile, 1), 0)
            log_term = jnp.where(rows < n, log_term, jnp.float32(0.0))
        out_ref[...] = log_term


def koleo_loss(feature: jax.Array, *, block: int = 256,
               use_bf16_dots: bool = False) -> jax.Array:
    """feature: (N, D). Returns scalar float32 KoLeo loss.

    use_bf16_dots=True runs the dots matmul in bf16 (faster MXU path); may flip
    nearest neighbors on near-ties vs the f32 reference.
    """
    n, d = feature.shape
    x = feature.astype(jnp.float32)

    d_pad = _round_up(d, 128)                      # lane-aligned feature dim
    tile = min(block, _round_up(n, 128))           # MXU-friendly square dots tile
    # Keep the double-buffered (tile, d_pad) input blocks plus the (tile, tile)
    # elementwise temporaries well inside default scoped VMEM budgets
    # (16 MiB v5e / 32 MiB v6e,v7x).
    while tile > 128 and (4 * tile * d_pad * 4 + 8 * tile * tile * 4) > (12 << 20):
        tile //= 2
    n_pad = _round_up(n, tile)
    grid_m = n_pad // tile
    grid = (grid_m, grid_m)

    if (n_pad, d_pad) != (n, d):
        x = jnp.pad(x, ((0, n_pad - n), (0, d_pad - d)))

    kernel = functools.partial(
        _koleo_kernel, n=n, d=d, tile=tile, n_pad=n_pad,
        use_bf16_dots=use_bf16_dots)

    per_row = pl.pallas_call(
        kernel,
        out_shape=jax.ShapeDtypeStruct((n_pad, 1), jnp.float32),
        grid_spec=pltpu.PrefetchScalarGridSpec(
            num_scalar_prefetch=0,
            grid=grid,
            in_specs=[
                pl.BlockSpec((tile, d_pad), lambda i, j: (i, 0)),   # query rows
                pl.BlockSpec((tile, d_pad), lambda i, j: (j, 0)),   # candidate rows
            ],
            out_specs=pl.BlockSpec((tile, 1), lambda i, j: (i, 0)),
            scratch_shapes=[pltpu.VMEM((tile, 1), jnp.float32)] * 4,
        ),
        compiler_params=pltpu.CompilerParams(
            dimension_semantics=("parallel", "arbitrary")),
        cost_estimate=pl.CostEstimate(
            flops=2 * n_pad * n_pad * (d_pad + 2),
            bytes_accessed=(grid_m + 1) * n_pad * d_pad * 4 + n_pad * 4,
            transcendentals=2 * n,
        ),
    )(x, x)

    return -jnp.sum(per_row) / jnp.float32(n)


def _koleo_ref(feature: jax.Array) -> jax.Array:
    """Pure-JAX reference mirroring the PyTorch module."""
    x = feature.astype(jnp.float32)
    n = x.shape[0]
    dots = x @ x.T
    dots = dots.at[jnp.arange(n), jnp.arange(n)].set(-1.0)
    idx = jnp.argmax(dots, axis=1)
    diff = x - x[idx] + 1e-6
    dist = jnp.sqrt(jnp.sum(diff * diff, axis=-1))
    return -jnp.mean(jnp.log(n * dist))


if __name__ == "__main__":
    key = jax.random.PRNGKey(0)

    # Small shape (exercises row/col padding masks, single tile).
    n1, d1 = 16, 32
    f1 = jax.random.normal(key, (n1, d1), dtype=jnp.float32)
    loss1 = jax.block_until_ready(koleo_loss(f1))
    ref1 = jax.block_until_ready(_koleo_ref(f1))
    assert jnp.allclose(loss1, ref1, rtol=1e-5, atol=1e-5), (loss1, ref1)

    # Larger shape (exercises the 2x2 tiled flash-style accumulation path,
    # with a small tile so multiple column blocks are reduced).
    n2, d2 = 300, 48
    f2 = jax.random.normal(jax.random.PRNGKey(1), (n2, d2), dtype=jnp.float32)
    loss2 = jax.block_until_ready(koleo_loss(f2, block=128))
    ref2 = jax.block_until_ready(_koleo_ref(f2))
    assert jnp.allclose(loss2, ref2, rtol=1e-4, atol=2e-3), (loss2, ref2)

    print("KERNEL_OK")
</pallas_src>

<mosaic_0001>
module attributes {stable_mosaic.version = 11 : i64} {
  func.func @_koleo_kernel(%arg0: i32, %arg1: i32, %arg2: memref<128x128xf32, #tpu.memory_space<vmem>>, %arg3: memref<128x128xf32, #tpu.memory_space<vmem>>, %arg4: memref<128x1xf32, #tpu.memory_space<vmem>>, %arg5: memref<128x1xf32, #tpu.memory_space<vmem>>, %arg6: memref<128x1xf32, #tpu.memory_space<vmem>>, %arg7: memref<128x1xf32, #tpu.memory_space<vmem>>, %arg8: memref<128x1xf32, #tpu.memory_space<vmem>>) attributes {dimension_semantics = [#tpu.dimension_semantics<parallel>, #tpu.dimension_semantics<arbitrary>], iteration_bounds = array<i64: 1, 1>, scalar_prefetch = 0 : i64, scratch_operands = 4 : i64, tpu.core_type = #tpu.core_type<tc>, window_params = [{transform_indices = @transform_0, window_bounds = array<i64: 128, 128>}, {transform_indices = @transform_1, window_bounds = array<i64: 128, 128>}, {transform_indices = @transform_2, window_bounds = array<i64: 128, 1>}]} {
    %c0_i32 = arith.constant 0 : i32
    %0 = arith.cmpi eq, %arg1, %c0_i32 : i32
    %1 = arith.extui %0 : i1 to i32
    %c0_i32_0 = arith.constant 0 : i32
    %2 = arith.cmpi ne, %1, %c0_i32_0 : i32
    scf.if %2 {
      %cst_34 = arith.constant 0xFF800000 : f32
      %62 = vector.broadcast %cst_34 : f32 to vector<128x1xf32>
      %c0_35 = arith.constant 0 : index
      %c0_36 = arith.constant 0 : index
      %63 = vector.load %arg5[%c0_35, %c0_36] : memref<128x1xf32, #tpu.memory_space<vmem>>, vector<128x1xf32>
      tpu.vector_store %arg5[%c0_35, %c0_36], %62 {strides = array<i32>} : memref<128x1xf32, #tpu.memory_space<vmem>>, vector<128x1xf32>,
      %cst_37 = arith.constant 0.000000e+00 : f32
      %64 = vector.broadcast %cst_37 : f32 to vector<128x1xf32>
      %c0_38 = arith.constant 0 : index
      %c0_39 = arith.constant 0 : index
      %65 = vector.load %arg6[%c0_38, %c0_39] : memref<128x1xf32, #tpu.memory_space<vmem>>, vector<128x1xf32>
      tpu.vector_store %arg6[%c0_38, %c0_39], %64 {strides = array<i32>} : memref<128x1xf32, #tpu.memory_space<vmem>>, vector<128x1xf32>,
      %cst_40 = arith.constant 0.000000e+00 : f32
      %66 = vector.broadcast %cst_40 : f32 to vector<128x1xf32>
      %c0_41 = arith.constant 0 : index
      %c0_42 = arith.constant 0 : index
      %67 = vector.load %arg7[%c0_41, %c0_42] : memref<128x1xf32, #tpu.memory_space<vmem>>, vector<128x1xf32>
      tpu.vector_store %arg7[%c0_41, %c0_42], %66 {strides = array<i32>} : memref<128x1xf32, #tpu.memory_space<vmem>>, vector<128x1xf32>,
      %cst_43 = arith.constant 0.000000e+00 : f32
      %68 = vector.broadcast %cst_43 : f32 to vector<128x1xf32>
      %c0_44 = arith.constant 0 : index
      %c0_45 = arith.constant 0 : index
      %69 = vector.load %arg8[%c0_44, %c0_45] : memref<128x1xf32, #tpu.memory_space<vmem>>, vector<128x1xf32>
      tpu.vector_store %arg8[%c0_44, %c0_45], %68 {strides = array<i32>} : memref<128x1xf32, #tpu.memory_space<vmem>>, vector<128x1xf32>,
    } else {
    }
    %c0 = arith.constant 0 : index
    %c0_1 = arith.constant 0 : index
    %3 = vector.load %arg2[%c0, %c0_1] : memref<128x128xf32, #tpu.memory_space<vmem>>, vector<128x128xf32>
    %c0_2 = arith.constant 0 : index
    %c0_3 = arith.constant 0 : index
    %4 = vector.load %arg3[%c0_2, %c0_3] : memref<128x128xf32, #tpu.memory_space<vmem>>, vector<128x128xf32>
    %cst = arith.constant dense<0.000000e+00> : vector<128x128xf32>
    %5 = tpu.matmul %3, %4, %cst {dimension_numbers = #tpu.dot_dimension_numbers<[1], [1], [0], [0], [0, 0, 1, 0], [], []>} : vector<128x128xf32>, vector<128x128xf32>, vector<128x128xf32> -> vector<128x128xf32>
    %c128_i32 = arith.constant 128 : i32
    %6 = arith.muli %arg0, %c128_i32 : i32
    %7 = tpu.iota {dimensions = array<i32: 0>} : vector<128x128xi32>
    %8 = vector.broadcast %6 : i32 to vector<128x128xi32>
    %9 = arith.addi %8, %7 : vector<128x128xi32>
    %10 = tpu.iota {dimensions = array<i32: 1>} : vector<128x128xi32>
    %c128_i32_4 = arith.constant 128 : i32
    %11 = arith.muli %arg1, %c128_i32_4 : i32
    %12 = vector.broadcast %11 : i32 to vector<128x128xi32>
    %13 = arith.addi %12, %10 : vector<128x128xi32>
    %14 = arith.cmpi eq, %9, %13 : vector<128x128xi32>
    %cst_5 = arith.constant -1.000000e+00 : f32
    %15 = vector.broadcast %cst_5 : f32 to vector<128x128xf32>
    %16 = arith.select %14, %15, %5 : vector<128x128xi1>, vector<128x128xf32>
    %c16_i32 = arith.constant 16 : i32
    %17 = vector.broadcast %c16_i32 : i32 to vector<128x128xi32>
    %18 = arith.cmpi sge, %13, %17 : vector<128x128xi32>
    %cst_6 = arith.constant 0xFF800000 : f32
    %19 = vector.broadcast %cst_6 : f32 to vector<128x128xf32>
    %20 = arith.select %18, %19, %16 : vector<128x128xi1>, vector<128x128xf32>
    %cst_7 = arith.constant dense<0xFF800000> : vector<128xf32>
    %21 = vector.multi_reduction <maximumf>, %20, %cst_7 [1] : vector<128x128xf32> to vector<128xf32>
    %22 = vector.shape_cast %21 : vector<128xf32> to vector<128x1xf32>
    %23 = vector.broadcast %22 : vector<128x1xf32> to vector<128x128xf32>
    %24 = arith.cmpf oeq, %20, %23 : vector<128x128xf32>
    %c128_i32_8 = arith.constant 128 : i32
    %25 = vector.broadcast %c128_i32_8 : i32 to vector<128x128xi32>
    %26 = arith.select %24, %10, %25 : vector<128x128xi1>, vector<128x128xi32>
    %cst_9 = arith.constant dense<2147483647> : vector<128xi32>
    %27 = vector.multi_reduction <minsi>, %26, %cst_9 [1] : vector<128x128xi32> to vector<128xi32>
    %28 = vector.shape_cast %27 : vector<128xi32> to vector<128x1xi32>
    %29 = vector.broadcast %28 : vector<128x1xi32> to vector<128x128xi32>
    %30 = arith.cmpi eq, %10, %29 : vector<128x128xi32>
    %31 = arith.extui %30 : vector<128x128xi1> to vector<128x128xi32>
    %32 = arith.sitofp %31 : vector<128x128xi32> to vector<128x128xf32>
    %33 = arith.mulf %4, %4 : vector<128x128xf32>
    %cst_10 = arith.constant dense<0.000000e+00> : vector<128xf32>
    %34 = vector.multi_reduction <add>, %33, %cst_10 [1] : vector<128x128xf32> to vector<128xf32>
    %35 = vector.shape_cast %34 : vector<128xf32> to vector<128x1xf32>
    %cst_11 = arith.constant dense<0.000000e+00> : vector<128xf32>
    %36 = vector.multi_reduction <add>, %4, %cst_11 [1] : vector<128x128xf32> to vector<128xf32>
    %37 = vector.shape_cast %36 : vector<128xf32> to vector<128x1xf32>
    %38 = tpu.concatenate %35, %37 in 1 : vector<128x1xf32>, vector<128x1xf32> -> vector<128x2xf32>
    %cst_12 = arith.constant dense<0.000000e+00> : vector<128x2xf32>
    %39 = tpu.matmul %32, %38, %cst_12 {dimension_numbers = #tpu.dot_dimension_numbers<[1], [0], [0], [1], [0, 0, 1, 1], [], []>} : vector<128x128xf32>, vector<128x2xf32>, vector<128x2xf32> -> vector<128x2xf32>
    %40 = vector.extract_strided_slice %39 {offsets = [0, 0], sizes = [128, 1], strides = [1, 1]} : vector<128x2xf32> to vector<128x1xf32>
    %41 = vector.extract_strided_slice %39 {offsets = [0, 1], sizes = [128, 1], strides = [1, 1]} : vector<128x2xf32> to vector<128x1xf32>
    %42 = arith.mulf %32, %5 : vector<128x128xf32>
    %cst_13 = arith.constant dense<0.000000e+00> : vector<128xf32>
    %43 = vector.multi_reduction <add>, %42, %cst_13 [1] : vector<128x128xf32> to vector<128xf32>
    %44 = vector.shape_cast %43 : vector<128xf32> to vector<128x1xf32>
    %c0_14 = arith.constant 0 : index
    %c0_15 = arith.constant 0 : index
    %45 = vector.load %arg5[%c0_14, %c0_15] : memref<128x1xf32, #tpu.memory_space<vmem>>, vector<128x1xf32>
    %46 = arith.cmpf ogt, %22, %45 : vector<128x1xf32>
    %c0_16 = arith.constant 0 : index
    %c0_17 = arith.constant 0 : index
    %47 = vector.load %arg6[%c0_16, %c0_17] : memref<128x1xf32, #tpu.memory_space<vmem>>, vector<128x1xf32>
    %48 = arith.select %46, %44, %47 : vector<128x1xi1>, vector<128x1xf32>
    %c0_18 = arith.constant 0 : index
    %c0_19 = arith.constant 0 : index
    %49 = vector.load %arg6[%c0_18, %c0_19] : memref<128x1xf32, #tpu.memory_space<vmem>>, vector<128x1xf32>
    tpu.vector_store %arg6[%c0_18, %c0_19], %48 {strides = array<i32>} : memref<128x1xf32, #tpu.memory_space<vmem>>, vector<128x1xf32>,
    %c0_20 = arith.constant 0 : index
    %c0_21 = arith.constant 0 : index
    %50 = vector.load %arg7[%c0_20, %c0_21] : memref<128x1xf32, #tpu.memory_space<vmem>>, vector<128x1xf32>
    %51 = arith.select %46, %40, %50 : vector<128x1xi1>, vector<128x1xf32>
    %c0_22 = arith.constant 0 : index
    %c0_23 = arith.constant 0 : index
    %52 = vector.load %arg7[%c0_22, %c0_23] : memref<128x1xf32, #tpu.memory_space<vmem>>, vector<128x1xf32>
    tpu.vector_store %arg7[%c0_22, %c0_23], %51 {strides = array<i32>} : memref<128x1xf32, #tpu.memory_space<vmem>>, vector<128x1xf32>,
    %c0_24 = arith.constant 0 : index
    %c0_25 = arith.constant 0 : index
    %53 = vector.load %arg8[%c0_24, %c0_25] : memref<128x1xf32, #tpu.memory_space<vmem>>, vector<128x1xf32>
    %54 = arith.select %46, %41, %53 : vector<128x1xi1>, vector<128x1xf32>
    %c0_26 = arith.constant 0 : index
    %c0_27 = arith.constant 0 : index
    %55 = vector.load %arg8[%c0_26, %c0_27] : memref<128x1xf32, #tpu.memory_space<vmem>>, vector<128x1xf32>
    tpu.vector_store %arg8[%c0_26, %c0_27], %54 {strides = array<i32>} : memref<128x1xf32, #tpu.memory_space<vmem>>, vector<128x1xf32>,
    %c0_28 = arith.constant 0 : index
    %c0_29 = arith.constant 0 : index
    %56 = vector.load %arg5[%c0_28, %c0_29] : memref<128x1xf32, #tpu.memory_space<vmem>>, vector<128x1xf32>
    %57 = arith.select %46, %22, %56 : vector<128x1xi1>, vector<128x1xf32>
    %c0_30 = arith.constant 0 : index
    %c0_31 = arith.constant 0 : index
    %58 = vector.load %arg5[%c0_30, %c0_31] : memref<128x1xf32, #tpu.memory_space<vmem>>, vector<128x1xf32>
    tpu.vector_store %arg5[%c0_30, %c0_31], %57 {strides = array<i32>} : memref<128x1xf32, #tpu.memory_space<vmem>>, vector<128x1xf32>,
    %c0_i32_32 = arith.constant 0 : i32
    %59 = arith.cmpi eq, %arg1, %c0_i32_32 : i32
    %60 = arith.extui %59 : i1 to i32
    %c0_i32_33 = arith.constant 0 : i32
    %61 = arith.cmpi ne, %60, %c0_i32_33 : i32
    scf.if %61 {
      %62 = arith.mulf %3, %3 : vector<128x128xf32>
      %cst_34 = arith.constant dense<0.000000e+00> : vector<128xf32>
      %63 = vector.multi_reduction <add>, %62, %cst_34 [1] : vector<128x128xf32> to vector<128xf32>
      %64 = vector.shape_cast %63 : vector<128xf32> to vector<128x1xf32>
      %cst_35 = arith.constant dense<0.000000e+00> : vector<128xf32>
      %65 = vector.multi_reduction <add>, %3, %cst_35 [1] : vector<128x128xf32> to vector<128xf32>
      %66 = vector.shape_cast %65 : vector<128xf32> to vector<128x1xf32>
      %c0_36 = arith.constant 0 : index
      %c0_37 = arith.constant 0 : index
      %67 = vector.load %arg7[%c0_36, %c0_37] : memref<128x1xf32, #tpu.memory_space<vmem>>, vector<128x1xf32>
      %68 = arith.addf %64, %67 : vector<128x1xf32>
      %c0_38 = arith.constant 0 : index
      %c0_39 = arith.constant 0 : index
      %69 = vector.load %arg6[%c0_38, %c0_39] : memref<128x1xf32, #tpu.memory_space<vmem>>, vector<128x1xf32>
      %cst_40 = arith.constant 2.000000e+00 : f32
      %70 = vector.broadcast %cst_40 : f32 to vector<128x1xf32>
      %71 = arith.mulf %70, %69 : vector<128x1xf32>
      %72 = arith.subf %68, %71 : vector<128x1xf32>
      %cst_41 = arith.constant 2.000000e+00 : f32
      %cst_42 = arith.constant 9.99999997E-7 : f32
      %73 = arith.mulf %cst_41, %cst_42 : f32
      %c0_43 = arith.constant 0 : index
      %c0_44 = arith.constant 0 : index
      %74 = vector.load %arg8[%c0_43, %c0_44] : memref<128x1xf32, #tpu.memory_space<vmem>>, vector<128x1xf32>
      %75 = arith.subf %66, %74 : vector<128x1xf32>
      %76 = vector.broadcast %73 : f32 to vector<128x1xf32>
      %77 = arith.mulf %76, %75 : vector<128x1xf32>
      %78 = arith.addf %72, %77 : vector<128x1xf32>
      %cst_45 = arith.constant 3.200000e+01 : f32
      %cst_46 = arith.constant 9.99999997E-7 : f32
      %79 = arith.mulf %cst_45, %cst_46 : f32
      %cst_47 = arith.constant 9.99999997E-7 : f32
      %80 = arith.mulf %79, %cst_47 : f32
      %81 = vector.broadcast %80 : f32 to vector<128x1xf32>
      %82 = arith.addf %78, %81 : vector<128x1xf32>
      %cst_48 = arith.constant 1.000000e-30 : f32
      %83 = vector.broadcast %cst_48 : f32 to vector<128x1xf32>
      %84 = arith.maximumf %82, %83 : vector<128x1xf32>
      %cst_49 = arith.constant 1.600000e+01 : f32
      %85 = math.log %cst_49 : f32
      %86 = math.log %84 : vector<128x1xf32>
      %cst_50 = arith.constant 5.000000e-01 : f32
      %87 = vector.broadcast %cst_50 : f32 to vector<128x1xf32>
      %88 = arith.mulf %87, %86 : vector<128x1xf32>
      %89 = vector.broadcast %85 : f32 to vector<128x1xf32>
      %90 = arith.addf %89, %88 : vector<128x1xf32>
      %c128_i32_51 = arith.constant 128 : i32
      %91 = arith.muli %arg0, %c128_i32_51 : i32
      %92 = tpu.iota {dimensions = array<i32: 0>} : vector<128x1xi32>
      %93 = vector.broadcast %91 : i32 to vector<128x1xi32>
      %94 = arith.addi %93, %92 : vector<128x1xi32>
      %c16_i32_52 = arith.constant 16 : i32
      %95 = vector.broadcast %c16_i32_52 : i32 to vector<128x1xi32>
      %96 = arith.cmpi slt, %94, %95 : vector<128x1xi32>
      %cst_53 = arith.constant 0.000000e+00 : f32
      %97 = vector.broadcast %cst_53 : f32 to vector<128x1xf32>
      %98 = arith.select %96, %90, %97 : vector<128x1xi1>, vector<128x1xf32>
      %c0_54 = arith.constant 0 : index
      %c0_55 = arith.constant 0 : index
      %99 = vector.load %arg4[%c0_54, %c0_55] : memref<128x1xf32, #tpu.memory_space<vmem>>, vector<128x1xf32>
      tpu.vector_store %arg4[%c0_54, %c0_55], %98 {strides = array<i32>} : memref<128x1xf32, #tpu.memory_space<vmem>>, vector<128x1xf32>,
    } else {
    }
    return
  }
  func.func @transform_0(%arg0: i32, %arg1: i32) -> (i32, i32) {
    %c0_i32 = arith.constant 0 : i32
    %c0_i32_0 = arith.constant 0 : i32
    return %arg0, %c0_i32 : i32, i32
  }
  func.func @transform_1(%arg0: i32, %arg1: i32) -> (i32, i32) {
    %c0_i32 = arith.constant 0 : i32
    %c0_i32_0 = arith.constant 0 : i32
    return %arg1, %c0_i32 : i32, i32
  }
  func.func @transform_2(%arg0: i32, %arg1: i32) -> (i32, i32) {
    %c0_i32 = arith.constant 0 : i32
    %c0_i32_0 = arith.constant 0 : i32
    return %arg0, %c0_i32 : i32, i32
  }
}

</mosaic_0001>

<llo_original>
// kernel: tpu_custom_call.1
$region0: #{tpu_custom_call.1}
  #allocation0 [shape = 'u32[]', space=smem, size = 0x4, offset = 0x4, fixed_abs, tag = 'smem constant byte address 0x4 - core index']
  #allocation1 [shape = 'u32[144,128]{1,0:T(1,128)}', space=vmem, size = 0x12000, scoped, tag = 'internal scratch']
  #allocation2 [shape = 'f32[128,1]{1,0:T(8,128)}', space=vmem, size = 0x10000, scoped, tag = 'scratch operand']
  #allocation3 [shape = 'f32[128,1]{1,0:T(8,128)}', space=vmem, size = 0x10000, scoped, tag = 'scratch operand']
  #allocation4 [shape = 'f32[128,1]{1,0:T(8,128)}', space=vmem, size = 0x10000, scoped, tag = 'scratch operand']
  #allocation5 [shape = 'f32[128,1]{1,0:T(8,128)}', space=vmem, size = 0x10000, scoped, tag = 'scratch operand']
  %s0 = inlined_call_operand.hbm [shape: f32[128,128], index: 0, kind: input, shape index: {}]
  %s1 = inlined_call_operand.hbm [shape: f32[128,128], index: 1, kind: input, shape index: {}]
  %s2 = inlined_call_operand.vmem [shape: f32[128,1], index: 2, kind: output, shape index: {}]
  %s3 = sld [smem:[#allocation0]]
  $region34: #{tpu_custom_call.1} parent=0
    _
  %s5 = ssub.s32 1, %s3
  %s6 = scalar_select 0, %s5, %s3
  $region1: #{tpu_custom_call.1} parent=0
    #allocation6 [shape = 'u8[65536]{0}', space=vmem, size = 0x10000, scoped, tag = 'input window, operand 0, single buffered']
    #allocation7 [shape = 's32[1]{0}', space=sflag, size = 0x4, scoped, tag = 'scoped memory for tpu_custom_call.1']
    #allocation8 [shape = 'u8[65536]{0}', space=vmem, size = 0x10000, scoped, tag = 'input window, operand 1, single buffered']
    #allocation9 [shape = 's32[1]{0}', space=sflag, size = 0x4, scoped, tag = 'scoped memory for tpu_custom_call.1']
    %7 = vsyncpa [#allocation7], 0
    %8 = vsyncpa [#allocation9], 0
    // Predicated region
    $region2: #{tpu_custom_call.1} parent=1 // pred_check
      _
    $region3: #{tpu_custom_call.1} parent=1 // pred_check_branch
      %10 = sbr.rel (0) target = $region5
    $region4: #{tpu_custom_call.1} parent=1 // pred_region
      %s12 = ssub.s32 2048, 2048
      %13 = vsyncadd [#allocation7], %s12
      %s14 = sshll.u32 [#allocation6], 4
      %s15 = int_to_ptr.vmem [resolvable:$true] %s14
      %20 = dma.hbm_to_vmem [thread:$0]  %s0, 2048, %s15, [#allocation7], 128, 128, 8
    $region5: #{tpu_custom_call.1} parent=1 // pred_fallthru
      _
    // Predicated region
    $region6: #{tpu_custom_call.1} parent=1 // pred_check
      _
    $region7: #{tpu_custom_call.1} parent=1 // pred_check_branch
      %22 = sbr.rel (0) target = $region9
    $region8: #{tpu_custom_call.1} parent=1 // pred_region
      %s24 = ssub.s32 2048, 2048
      %25 = vsyncadd [#allocation9], %s24
      %s26 = sshll.u32 [#allocation8], 4
      %s27 = int_to_ptr.vmem [resolvable:$true] %s26
      %32 = dma.hbm_to_vmem [thread:$0]  %s1, 2048, %s27, [#allocation9], 128, 128, 8
    $region9: #{tpu_custom_call.1} parent=1 // pred_fallthru
      _
    // Predicated region
    $region10: #{tpu_custom_call.1} parent=1 // pred_check
      _
    $region11: #{tpu_custom_call.1} parent=1 // pred_check_branch
      %34 = sbr.rel (0) target = $region13
    $region12: #{tpu_custom_call.1} parent=1 // pred_region
      %35 = dma.done [#allocation7], 2048
    $region13: #{tpu_custom_call.1} parent=1 // pred_fallthru
      _
    // Predicated region
    $region14: #{tpu_custom_call.1} parent=1 // pred_check
      _
    $region15: #{tpu_custom_call.1} parent=1 // pred_check_branch
      %37 = sbr.rel (0) target = $region17
    $region16: #{tpu_custom_call.1} parent=1 // pred_region
      %38 = dma.done [#allocation9], 2048
    $region17: #{tpu_custom_call.1} parent=1 // pred_fallthru
      _
    %p39 = scmp.eq.s32.totalorder 0, 0
    // Predicated region
    $region18: #{tpu_custom_call.1} parent=1 // pred_check
      %p40 = pneg %p39
    $region19: #{tpu_custom_call.1} parent=1 // pred_check_branch
      %42 = sbr.rel (%p40) target = $region21
    $region20: #{tpu_custom_call.1} parent=1 // pred_region
      %vm43 = vcmask 7168
      %44 = vst.msk [vmem:[#allocation2] sm:$0xff] %vm43, -inf
      %45 = vst.msk [vmem:[#allocation2 + $0x8] sm:$0xff] %vm43, -inf
      %46 = vst.msk [vmem:[#allocation2 + $0x10] sm:$0xff] %vm43, -inf
      %47 = vst.msk [vmem:[#allocation2 + $0x18] sm:$0xff] %vm43, -inf
      %48 = vst.msk [vmem:[#allocation2 + $0x20] sm:$0xff] %vm43, -inf
      %49 = vst.msk [vmem:[#allocation2 + $0x28] sm:$0xff] %vm43, -inf
      %50 = vst.msk [vmem:[#allocation2 + $0x30] sm:$0xff] %vm43, -inf
      %51 = vst.msk [vmem:[#allocation2 + $0x38] sm:$0xff] %vm43, -inf
      %52 = vst.msk [vmem:[#allocation2 + $0x40] sm:$0xff] %vm43, -inf
      %53 = vst.msk [vmem:[#allocation2 + $0x48] sm:$0xff] %vm43, -inf
      %54 = vst.msk [vmem:[#allocation2 + $0x50] sm:$0xff] %vm43, -inf
      %55 = vst.msk [vmem:[#allocation2 + $0x58] sm:$0xff] %vm43, -inf
      %56 = vst.msk [vmem:[#allocation2 + $0x60] sm:$0xff] %vm43, -inf
      %57 = vst.msk [vmem:[#allocation2 + $0x68] sm:$0xff] %vm43, -inf
      %58 = vst.msk [vmem:[#allocation2 + $0x70] sm:$0xff] %vm43, -inf
      %59 = vst.msk [vmem:[#allocation2 + $0x78] sm:$0xff] %vm43, -inf
      %60 = vst.msk [vmem:[#allocation3] sm:$0xff] %vm43, 0.0
      %61 = vst.msk [vmem:[#allocation3 + $0x8] sm:$0xff] %vm43, 0.0
      %62 = vst.msk [vmem:[#allocation3 + $0x10] sm:$0xff] %vm43, 0.0
      %63 = vst.msk [vmem:[#allocation3 + $0x18] sm:$0xff] %vm43, 0.0
      %64 = vst.msk [vmem:[#allocation3 + $0x20] sm:$0xff] %vm43, 0.0
      %65 = vst.msk [vmem:[#allocation3 + $0x28] sm:$0xff] %vm43, 0.0
      %66 = vst.msk [vmem:[#allocation3 + $0x30] sm:$0xff] %vm43, 0.0
      %67 = vst.msk [vmem:[#allocation3 + $0x38] sm:$0xff] %vm43, 0.0
      %68 = vst.msk [vmem:[#allocation3 + $0x40] sm:$0xff] %vm43, 0.0
      %69 = vst.msk [vmem:[#allocation3 + $0x48] sm:$0xff] %vm43, 0.0
      %70 = vst.msk [vmem:[#allocation3 + $0x50] sm:$0xff] %vm43, 0.0
      %71 = vst.msk [vmem:[#allocation3 + $0x58] sm:$0xff] %vm43, 0.0
      %72 = vst.msk [vmem:[#allocation3 + $0x60] sm:$0xff] %vm43, 0.0
      %73 = vst.msk [vmem:[#allocation3 + $0x68] sm:$0xff] %vm43, 0.0
      %74 = vst.msk [vmem:[#allocation3 + $0x70] sm:$0xff] %vm43, 0.0
      %75 = vst.msk [vmem:[#allocation3 + $0x78] sm:$0xff] %vm43, 0.0
      %76 = vst.msk [vmem:[#allocation4] sm:$0xff] %vm43, 0.0
      %77 = vst.msk [vmem:[#allocation4 + $0x8] sm:$0xff] %vm43, 0.0
      %78 = vst.msk [vmem:[#allocation4 + $0x10] sm:$0xff] %vm43, 0.0
      %79 = vst.msk [vmem:[#allocation4 + $0x18] sm:$0xff] %vm43, 0.0
      %80 = vst.msk [vmem:[#allocation4 + $0x20] sm:$0xff] %vm43, 0.0
      %81 = vst.msk [vmem:[#allocation4 + $0x28] sm:$0xff] %vm43, 0.0
      %82 = vst.msk [vmem:[#allocation4 + $0x30] sm:$0xff] %vm43, 0.0
      %83 = vst.msk [vmem:[#allocation4 + $0x38] sm:$0xff] %vm43, 0.0
      %84 = vst.msk [vmem:[#allocation4 + $0x40] sm:$0xff] %vm43, 0.0
      %85 = vst.msk [vmem:[#allocation4 + $0x48] sm:$0xff] %vm43, 0.0
      %86 = vst.msk [vmem:[#allocation4 + $0x50] sm:$0xff] %vm43, 0.0
      %87 = vst.msk [vmem:[#allocation4 + $0x58] sm:$0xff] %vm43, 0.0
      %88 = vst.msk [vmem:[#allocation4 + $0x60] sm:$0xff] %vm43, 0.0
      %89 = vst.msk [vmem:[#allocation4 + $0x68] sm:$0xff] %vm43, 0.0
      %90 = vst.msk [vmem:[#allocation4 + $0x70] sm:$0xff] %vm43, 0.0
      %91 = vst.msk [vmem:[#allocation4 + $0x78] sm:$0xff] %vm43, 0.0
      %92 = vst.msk [vmem:[#allocation5] sm:$0xff] %vm43, 0.0
      %93 = vst.msk [vmem:[#allocation5 + $0x8] sm:$0xff] %vm43, 0.0
      %94 = vst.msk [vmem:[#allocation5 + $0x10] sm:$0xff] %vm43, 0.0
      %95 = vst.msk [vmem:[#allocation5 + $0x18] sm:$0xff] %vm43, 0.0
      %96 = vst.msk [vmem:[#allocation5 + $0x20] sm:$0xff] %vm43, 0.0
      %97 = vst.msk [vmem:[#allocation5 + $0x28] sm:$0xff] %vm43, 0.0
      %98 = vst.msk [vmem:[#allocation5 + $0x30] sm:$0xff] %vm43, 0.0
      %99 = vst.msk [vmem:[#allocation5 + $0x38] sm:$0xff] %vm43, 0.0
      %100 = vst.msk [vmem:[#allocation5 + $0x40] sm:$0xff] %vm43, 0.0
      %101 = vst.msk [vmem:[#allocation5 + $0x48] sm:$0xff] %vm43, 0.0
      %102 = vst.msk [vmem:[#allocation5 + $0x50] sm:$0xff] %vm43, 0.0
      %103 = vst.msk [vmem:[#allocation5 + $0x58] sm:$0xff] %vm43, 0.0
      %104 = vst.msk [vmem:[#allocation5 + $0x60] sm:$0xff] %vm43, 0.0
      %105 = vst.msk [vmem:[#allocation5 + $0x68] sm:$0xff] %vm43, 0.0
      %106 = vst.msk [vmem:[#allocation5 + $0x70] sm:$0xff] %vm43, 0.0
      %107 = vst.msk [vmem:[#allocation5 + $0x78] sm:$0xff] %vm43, 0.0
    $region21: #{tpu_custom_call.1} parent=1 // pred_fallthru
      _
    %v108 = vld [vmem:[#allocation6] sm:$0xff]
    %v109 = vld [vmem:[#allocation6 + $0x8] sm:$0xff]
    %v110 = vld [vmem:[#allocation6 + $0x10] sm:$0xff]
    %v111 = vld [vmem:[#allocation6 + $0x18] sm:$0xff]
    %v112 = vld [vmem:[#allocation6 + $0x20] sm:$0xff]
    %v113 = vld [vmem:[#allocation6 + $0x28] sm:$0xff]
    %v114 = vld [vmem:[#allocation6 + $0x30] sm:$0xff]
    %v115 = vld [vmem:[#allocation6 + $0x38] sm:$0xff]
    %v116 = vld [vmem:[#allocation6 + $0x40] sm:$0xff]
    %v117 = vld [vmem:[#allocation6 + $0x48] sm:$0xff]
    %v118 = vld [vmem:[#allocation6 + $0x50] sm:$0xff]
    %v119 = vld [vmem:[#allocation6 + $0x58] sm:$0xff]
    %v120 = vld [vmem:[#allocation6 + $0x60] sm:$0xff]
    %v121 = vld [vmem:[#allocation6 + $0x68] sm:$0xff]
    %v122 = vld [vmem:[#allocation6 + $0x70] sm:$0xff]
    %v123 = vld [vmem:[#allocation6 + $0x78] sm:$0xff]
    %v124 = vld [vmem:[#allocation8] sm:$0xff]
    %v125 = vld [vmem:[#allocation8 + $0x8] sm:$0xff]
    %v126 = vld [vmem:[#allocation8 + $0x10] sm:$0xff]
    %v127 = vld [vmem:[#allocation8 + $0x18] sm:$0xff]
    %v128 = vld [vmem:[#allocation8 + $0x20] sm:$0xff]
    %v129 = vld [vmem:[#allocation8 + $0x28] sm:$0xff]
    %v130 = vld [vmem:[#allocation8 + $0x30] sm:$0xff]
    %v131 = vld [vmem:[#allocation8 + $0x38] sm:$0xff]
    %v132 = vld [vmem:[#allocation8 + $0x40] sm:$0xff]
    %v133 = vld [vmem:[#allocation8 + $0x48] sm:$0xff]
    %v134 = vld [vmem:[#allocation8 + $0x50] sm:$0xff]
    %v135 = vld [vmem:[#allocation8 + $0x58] sm:$0xff]
    %v136 = vld [vmem:[#allocation8 + $0x60] sm:$0xff]
    %v137 = vld [vmem:[#allocation8 + $0x68] sm:$0xff]
    %v138 = vld [vmem:[#allocation8 + $0x70] sm:$0xff]
    %v139 = vld [vmem:[#allocation8 + $0x78] sm:$0xff]
    %140 = vmatprep.subr.mxu0 0.0
    %141 = vmatpush1.xpose.msra.mxu0 %v124
    %142 = vmatprep.subr.mxu0 0.0
    %143 = vmatpush1.xpose.msra.mxu0 %v125
    %144 = vmatprep.subr.mxu0 0.0
    %145 = vmatpush1.xpose.msra.mxu0 %v126
    %146 = vmatprep.subr.mxu0 0.0
    %147 = vmatpush1.xpose.msra.mxu0 %v127
    %148 = vmatprep.subr.mxu0 0.0
    %149 = vmatpush1.xpose.msra.mxu0 %v128
    %150 = vmatprep.subr.mxu0 0.0
    %151 = vmatpush1.xpose.msra.mxu0 %v129
    %152 = vmatprep.subr.mxu0 0.0
    %153 = vmatpush1.xpose.msra.mxu0 %v130
    %154 = vmatprep.subr.mxu0 0.0
    %155 = vmatpush1.xpose.msra.mxu0 %v131
    %156 = vmatprep.subr.mxu0 0.0
    %157 = vmatpush1.xpose.msra.mxu0 %v132
    %158 = vmatprep.subr.mxu0 0.0
    %159 = vmatpush1.xpose.msra.mxu0 %v133
    %160 = vmatprep.subr.mxu0 0.0
    %161 = vmatpush1.xpose.msra.mxu0 %v134
    %162 = vmatprep.subr.mxu0 0.0
    %163 = vmatpush1.xpose.msra.mxu0 %v135
    %164 = vmatprep.subr.mxu0 0.0
    %165 = vmatpush1.xpose.msra.mxu0 %v136
    %166 = vmatprep.subr.mxu0 0.0
    %167 = vmatpush1.xpose.msra.mxu0 %v137
    %168 = vmatprep.subr.mxu0 0.0
    %169 = vmatpush1.xpose.msra.mxu0 %v138
    %170 = vmatprep.subr.mxu0 0.0
    %171 = vmatpush1.xpose.msra.mxu0 %v139
    %172 = vmatprep.subr.mxu0 0.0
    %173 = vmatpush1.xpose.msra.mxu0 0.0
    %174 = vmatprep.subr.mxu0 0.0
    %175 = vmatpush1.xpose.msra.mxu0 0.0
    %176 = vmatprep.subr.mxu0 0.0
    %177 = vmatpush1.xpose.msra.mxu0 0.0
    %178 = vmatprep.subr.mxu0 0.0
    %179 = vmatpush1.xpose.msra.mxu0 0.0
    %180 = vmatprep.subr.mxu0 0.0
    %181 = vmatpush1.xpose.msra.mxu0 0.0
    %182 = vmatprep.subr.mxu0 0.0
    %183 = vmatpush1.xpose.msra.mxu0 0.0
    %184 = vmatprep.subr.mxu0 0.0
    %185 = vmatpush1.xpose.msra.mxu0 0.0
    %186 = vmatprep.subr.mxu0 0.0
    %187 = vmatpush1.xpose.msra.mxu0 0.0
    %188 = vmatprep.subr.mxu0 0.0
    %189 = vmatpush1.xpose.msra.mxu0 0.0
    %190 = vmatprep.subr.mxu0 0.0
    %191 = vmatpush1.xpose.msra.mxu0 0.0
    %192 = vmatprep.subr.mxu0 0.0
    %193 = vmatpush1.xpose.msra.mxu0 0.0
    %194 = vmatprep.subr.mxu0 0.0
    %195 = vmatpush1.xpose.msra.mxu0 0.0
    %196 = vmatprep.subr.mxu0 0.0
    %197 = vmatpush1.xpose.msra.mxu0 0.0
    %198 = vmatprep.subr.mxu0 0.0
    %199 = vmatpush1.xpose.msra.mxu0 0.0
    %200 = vmatprep.subr.mxu0 0.0
    %201 = vmatpush1.xpose.msra.mxu0 0.0
    %202 = vmatprep.subr.mxu0 0.0
    %203 = vmatpush1.xpose.msra.mxu0 0.0
    %204 = vmatprep.mubr.f32.mxu0 0.0
    %205 = vmatmul.mubr.f32.gmra.mrb[0].mxu0 %v108
    %v206 = vpop.f32.mrb[0].mxu0
    %v207 = vadd.f32 0.0, %v206
    %v208 = vpop.f32.mrb[0].mxu0
    %209 = vmatprep.mubr.f32.mxu0 0.0
    %210 = vmatmul.mubr.f32.gmra.mrb[0].mxu0 %v109
    %v211 = vpop.f32.mrb[0].mxu0
    %v212 = vadd.f32 0.0, %v211
    %v213 = vpop.f32.mrb[0].mxu0
    %214 = vmatprep.mubr.f32.mxu0 0.0
    %215 = vmatmul.mubr.f32.gmra.mrb[0].mxu0 %v110
    %v216 = vpop.f32.mrb[0].mxu0
    %v217 = vadd.f32 0.0, %v216
    %v218 = vpop.f32.mrb[0].mxu0
    %219 = vmatprep.mubr.f32.mxu0 0.0
    %220 = vmatmul.mubr.f32.gmra.mrb[0].mxu0 %v111
    %v221 = vpop.f32.mrb[0].mxu0
    %v222 = vadd.f32 0.0, %v221
    %v223 = vpop.f32.mrb[0].mxu0
    %224 = vmatprep.mubr.f32.mxu0 0.0
    %225 = vmatmul.mubr.f32.gmra.mrb[0].mxu0 %v112
    %v226 = vpop.f32.mrb[0].mxu0
    %v227 = vadd.f32 0.0, %v226
    %v228 = vpop.f32.mrb[0].mxu0
    %229 = vmatprep.mubr.f32.mxu0 0.0
    %230 = vmatmul.mubr.f32.gmra.mrb[0].mxu0 %v113
    %v231 = vpop.f32.mrb[0].mxu0
    %v232 = vadd.f32 0.0, %v231
    %v233 = vpop.f32.mrb[0].mxu0
    %234 = vmatprep.mubr.f32.mxu0 0.0
    %235 = vmatmul.mubr.f32.gmra.mrb[0].mxu0 %v114
    %v236 = vpop.f32.mrb[0].mxu0
    %v237 = vadd.f32 0.0, %v236
    %v238 = vpop.f32.mrb[0].mxu0
    %239 = vmatprep.mubr.f32.mxu0 0.0
    %240 = vmatmul.mubr.f32.gmra.mrb[0].mxu0 %v115
    %v241 = vpop.f32.mrb[0].mxu0
    %v242 = vadd.f32 0.0, %v241
    %v243 = vpop.f32.mrb[0].mxu0
    %244 = vmatprep.mubr.f32.mxu0 0.0
    %245 = vmatmul.mubr.f32.gmra.mrb[0].mxu0 %v116
    %v246 = vpop.f32.mrb[0].mxu0
    %v247 = vadd.f32 0.0, %v246
    %v248 = vpop.f32.mrb[0].mxu0
    %249 = vmatprep.mubr.f32.mxu0 0.0
    %250 = vmatmul.mubr.f32.gmra.mrb[0].mxu0 %v117
    %v251 = vpop.f32.mrb[0].mxu0
    %v252 = vadd.f32 0.0, %v251
    %v253 = vpop.f32.mrb[0].mxu0
    %254 = vmatprep.mubr.f32.mxu0 0.0
    %255 = vmatmul.mubr.f32.gmra.mrb[0].mxu0 %v118
    %v256 = vpop.f32.mrb[0].mxu0
    %v257 = vadd.f32 0.0, %v256
    %v258 = vpop.f32.mrb[0].mxu0
    %259 = vmatprep.mubr.f32.mxu0 0.0
    %260 = vmatmul.mubr.f32.gmra.mrb[0].mxu0 %v119
    %v261 = vpop.f32.mrb[0].mxu0
    %v262 = vadd.f32 0.0, %v261
    %v263 = vpop.f32.mrb[0].mxu0
    %264 = vmatprep.mubr.f32.mxu0 0.0
    %265 = vmatmul.mubr.f32.gmra.mrb[0].mxu0 %v120
    %v266 = vpop.f32.mrb[0].mxu0
    %v267 = vadd.f32 0.0, %v266
    %v268 = vpop.f32.mrb[0].mxu0
    %269 = vmatprep.mubr.f32.mxu0 0.0
    %270 = vmatmul.mubr.f32.gmra.mrb[0].mxu0 %v121
    %v271 = vpop.f32.mrb[0].mxu0
    %v272 = vadd.f32 0.0, %v271
    %v273 = vpop.f32.mrb[0].mxu0
    %274 = vmatprep.mubr.f32.mxu0 0.0
    %275 = vmatmul.mubr.f32.gmra.mrb[0].mxu0 %v122
    %v276 = vpop.f32.mrb[0].mxu0
    %v277 = vadd.f32 0.0, %v276
    %v278 = vpop.f32.mrb[0].mxu0
    %279 = vmatprep.mubr.f32.mxu0 0.0
    %280 = vmatmul.mubr.f32.gmra.mrb[0].mxu0 %v123
    %v281 = vpop.f32.mrb[0].mxu0
    %v282 = vadd.f32 0.0, %v281
    %v283 = vpop.f32.mrb[0].mxu0
    %284 = vdwg.mxu0
    %s285 = smul.u32 0, 128
    %v286 = vlaneseq
    %v287 = vshrl.u32 %v286, 7
    %v288 = vadd.s32 %v287, 8
    %v289 = vadd.s32 %v287, 16
    %v290 = vadd.s32 %v287, 24
    %v291 = vadd.s32 %v287, 32
    %v292 = vadd.s32 %v287, 40
    %v293 = vadd.s32 %v287, 48
    %v294 = vadd.s32 %v287, 56
    %v295 = vadd.s32 %v287, 64
    %v296 = vadd.s32 %v287, 72
    %v297 = vadd.s32 %v287, 80
    %v298 = vadd.s32 %v287, 88
    %v299 = vadd.s32 %v287, 96
    %v300 = vadd.s32 %v287, 104
    %v301 = vadd.s32 %v287, 112
    %v302 = vadd.s32 %v287, 120
    %v303 = vstv %s285
    %v304 = vadd.s32 %v303, %v287
    %v305 = vadd.s32 %v303, %v288
    %v306 = vadd.s32 %v303, %v289
    %v307 = vadd.s32 %v303, %v290
    %v308 = vadd.s32 %v303, %v291
    %v309 = vadd.s32 %v303, %v292
    %v310 = vadd.s32 %v303, %v293
    %v311 = vadd.s32 %v303, %v294
    %v312 = vadd.s32 %v303, %v295
    %v313 = vadd.s32 %v303, %v296
    %v314 = vadd.s32 %v303, %v297
    %v315 = vadd.s32 %v303, %v298
    %v316 = vadd.s32 %v303, %v299
    %v317 = vadd.s32 %v303, %v300
    %v318 = vadd.s32 %v303, %v301
    %v319 = vadd.s32 %v303, %v302
    %v320 = vlaneseq
    %v321 = vand.u32 %v320, 127
    %s322 = smul.u32 0, 128
    %v323 = vstv %s322
    %v324 = vadd.s32 %v323, %v321
    %vm325 = vcmp.eq.s32.totalorder %v304, %v324
    %vm326 = vcmp.eq.s32.totalorder %v305, %v324
    %vm327 = vcmp.eq.s32.totalorder %v306, %v324
    %vm328 = vcmp.eq.s32.totalorder %v307, %v324
    %vm329 = vcmp.eq.s32.totalorder %v308, %v324
    %vm330 = vcmp.eq.s32.totalorder %v309, %v324
    %vm331 = vcmp.eq.s32.totalorder %v310, %v324
    %vm332 = vcmp.eq.s32.totalorder %v311, %v324
    %vm333 = vcmp.eq.s32.totalorder %v312, %v324
    %vm334 = vcmp.eq.s32.totalorder %v313, %v324
    %vm335 = vcmp.eq.s32.totalorder %v314, %v324
    %vm336 = vcmp.eq.s32.totalorder %v315, %v324
    %vm337 = vcmp.eq.s32.totalorder %v316, %v324
    %vm338 = vcmp.eq.s32.totalorder %v317, %v324
    %vm339 = vcmp.eq.s32.totalorder %v318, %v324
    %vm340 = vcmp.eq.s32.totalorder %v319, %v324
    %v341 = vsel %vm325, -1.0, %v207
    %v342 = vsel %vm326, -1.0, %v212
    %v343 = vsel %vm327, -1.0, %v217
    %v344 = vsel %vm328, -1.0, %v222
    %v345 = vsel %vm329, -1.0, %v227
    %v346 = vsel %vm330, -1.0, %v232
    %v347 = vsel %vm331, -1.0, %v237
    %v348 = vsel %vm332, -1.0, %v242
    %v349 = vsel %vm333, -1.0, %v247
    %v350 = vsel %vm334, -1.0, %v252
    %v351 = vsel %vm335, -1.0, %v257
    %v352 = vsel %vm336, -1.0, %v262
    %v353 = vsel %vm337, -1.0, %v267
    %v354 = vsel %vm338, -1.0, %v272
    %v355 = vsel %vm339, -1.0, %v277
    %v356 = vsel %vm340, -1.0, %v282
    %vm357 = vcmp.ge.s32.totalorder %v324, 16
    %v358 = vsel %vm357, -inf, %v341
    %v359 = vsel %vm357, -inf, %v342
    %v360 = vsel %vm357, -inf, %v343
    %v361 = vsel %vm357, -inf, %v344
    %v362 = vsel %vm357, -inf, %v345
    %v363 = vsel %vm357, -inf, %v346
    %v364 = vsel %vm357, -inf, %v347
    %v365 = vsel %vm357, -inf, %v348
    %v366 = vsel %vm357, -inf, %v349
    %v367 = vsel %vm357, -inf, %v350
    %v368 = vsel %vm357, -inf, %v351
    %v369 = vsel %vm357, -inf, %v352
    %v370 = vsel %vm357, -inf, %v353
    %v371 = vsel %vm357, -inf, %v354
    %v372 = vsel %vm357, -inf, %v355
    %v373 = vsel %vm357, -inf, %v356
    %374 = vmax.xlane.f32.xlu0 %v358
    %v375 = vpop.xlane.xlu0 %374
    %376 = vmax.xlane.f32.xlu0 %v359
    %v377 = vpop.xlane.xlu0 %376
    %378 = vmax.xlane.f32.xlu0 %v360
    %v379 = vpop.xlane.xlu0 %378
    %380 = vmax.xlane.f32.xlu0 %v361
    %v381 = vpop.xlane.xlu0 %380
    %382 = vmax.xlane.f32.xlu0 %v362
    %v383 = vpop.xlane.xlu0 %382
    %384 = vmax.xlane.f32.xlu0 %v363
    %v385 = vpop.xlane.xlu0 %384
    %386 = vmax.xlane.f32.xlu0 %v364
    %v387 = vpop.xlane.xlu0 %386
    %388 = vmax.xlane.f32.xlu0 %v365
    %v389 = vpop.xlane.xlu0 %388
    %390 = vmax.xlane.f32.xlu0 %v366
    %v391 = vpop.xlane.xlu0 %390
    %392 = vmax.xlane.f32.xlu0 %v367
    %v393 = vpop.xlane.xlu0 %392
    %394 = vmax.xlane.f32.xlu0 %v368
    %v395 = vpop.xlane.xlu0 %394
    %396 = vmax.xlane.f32.xlu0 %v369
    %v397 = vpop.xlane.xlu0 %396
    %398 = vmax.xlane.f32.xlu0 %v370
    %v399 = vpop.xlane.xlu0 %398
    %400 = vmax.xlane.f32.xlu0 %v371
    %v401 = vpop.xlane.xlu0 %400
    %402 = vmax.xlane.f32.xlu0 %v372
    %v403 = vpop.xlane.xlu0 %402
    %404 = vmax.xlane.f32.xlu0 %v373
    %v405 = vpop.xlane.xlu0 %404
    %vm406 = vcmp.eq.f32.partialorder %v358, %v375
    %vm407 = vcmp.eq.f32.partialorder %v359, %v377
    %vm408 = vcmp.eq.f32.partialorder %v360, %v379
    %vm409 = vcmp.eq.f32.partialorder %v361, %v381
    %vm410 = vcmp.eq.f32.partialorder %v362, %v383
    %vm411 = vcmp.eq.f32.partialorder %v363, %v385
    %vm412 = vcmp.eq.f32.partialorder %v364, %v387
    %vm413 = vcmp.eq.f32.partialorder %v365, %v389
    %vm414 = vcmp.eq.f32.partialorder %v366, %v391
    %vm415 = vcmp.eq.f32.partialorder %v367, %v393
    %vm416 = vcmp.eq.f32.partialorder %v368, %v395
    %vm417 = vcmp.eq.f32.partialorder %v369, %v397
    %vm418 = vcmp.eq.f32.partialorder %v370, %v399
    %vm419 = vcmp.eq.f32.partialorder %v371, %v401
    %vm420 = vcmp.eq.f32.partialorder %v372, %v403
    %vm421 = vcmp.eq.f32.partialorder %v373, %v405
    %v422 = vsel %vm406, %v321, 128
    %v423 = vsel %vm407, %v321, 128
    %v424 = vsel %vm408, %v321, 128
    %v425 = vsel %vm409, %v321, 128
    %v426 = vsel %vm410, %v321, 128
    %v427 = vsel %vm411, %v321, 128
    %v428 = vsel %vm412, %v321, 128
    %v429 = vsel %vm413, %v321, 128
    %v430 = vsel %vm414, %v321, 128
    %v431 = vsel %vm415, %v321, 128
    %v432 = vsel %vm416, %v321, 128
    %v433 = vsel %vm417, %v321, 128
    %v434 = vsel %vm418, %v321, 128
    %v435 = vsel %vm419, %v321, 128
    %v436 = vsel %vm420, %v321, 128
    %v437 = vsel %vm421, %v321, 128
    %v438 = vand.u32 %v422, 65535
    %v439 = vshra.s32 %v422, 16
    %v440 = vcvt.s32.f32 %v438
    %v441 = vcvt.s32.f32 %v439
    %442 = vmin.xlane.f32.xlu0 %v441
    %v443 = vpop.xlane.xlu0 %442
    %vm444 = vcmp.eq.f32.partialorder %v441, %v443
    %v445 = vsel %vm444, %v440, inf
    %446 = vmin.xlane.f32.xlu0 %v445
    %v447 = vpop.xlane.xlu0 %446
    %v448 = vcvt.f32.s32 %v447
    %v449 = vcvt.f32.s32 %v443
    %v450 = vshll.u32 %v449, 16
    %v451 = vadd.s32 %v450, %v448
    %v452 = vand.u32 %v423, 65535
    %v453 = vshra.s32 %v423, 16
    %v454 = vcvt.s32.f32 %v452
    %v455 = vcvt.s32.f32 %v453
    %456 = vmin.xlane.f32.xlu0 %v455
    %v457 = vpop.xlane.xlu0 %456
    %vm458 = vcmp.eq.f32.partialorder %v455, %v457
    %v459 = vsel %vm458, %v454, inf
    %460 = vmin.xlane.f32.xlu0 %v459
    %v461 = vpop.xlane.xlu0 %460
    %v462 = vcvt.f32.s32 %v461
    %v463 = vcvt.f32.s32 %v457
    %v464 = vshll.u32 %v463, 16
    %v465 = vadd.s32 %v464, %v462
    %v466 = vand.u32 %v424, 65535
    %v467 = vshra.s32 %v424, 16
    %v468 = vcvt.s32.f32 %v466
    %v469 = vcvt.s32.f32 %v467
    %470 = vmin.xlane.f32.xlu0 %v469
    %v471 = vpop.xlane.xlu0 %470
    %vm472 = vcmp.eq.f32.partialorder %v469, %v471
    %v473 = vsel %vm472, %v468, inf
    %474 = vmin.xlane.f32.xlu0 %v473
    %v475 = vpop.xlane.xlu0 %474
    %v476 = vcvt.f32.s32 %v475
    %v477 = vcvt.f32.s32 %v471
    %v478 = vshll.u32 %v477, 16
    %v479 = vadd.s32 %v478, %v476
    %v480 = vand.u32 %v425, 65535
    %v481 = vshra.s32 %v425, 16
    %v482 = vcvt.s32.f32 %v480
    %v483 = vcvt.s32.f32 %v481
    %484 = vmin.xlane.f32.xlu0 %v483
    %v485 = vpop.xlane.xlu0 %484
    %vm486 = vcmp.eq.f32.partialorder %v483, %v485
    %v487 = vsel %vm486, %v482, inf
    %488 = vmin.xlane.f32.xlu0 %v487
    %v489 = vpop.xlane.xlu0 %488
    %v490 = vcvt.f32.s32 %v489
    %v491 = vcvt.f32.s32 %v485
    %v492 = vshll.u32 %v491, 16
    %v493 = vadd.s32 %v492, %v490
    %v494 = vand.u32 %v426, 65535
    %v495 = vshra.s32 %v426, 16
    %v496 = vcvt.s32.f32 %v494
    %v497 = vcvt.s32.f32 %v495
    %498 = vmin.xlane.f32.xlu0 %v497
    %v499 = vpop.xlane.xlu0 %498
    %vm500 = vcmp.eq.f32.partialorder %v497, %v499
    %v501 = vsel %vm500, %v496, inf
    %502 = vmin.xlane.f32.xlu0 %v501
    %v503 = vpop.xlane.xlu0 %502
    %v504 = vcvt.f32.s32 %v503
    %v505 = vcvt.f32.s32 %v499
    %v506 = vshll.u32 %v505, 16
    %v507 = vadd.s32 %v506, %v504
    %v508 = vand.u32 %v427, 65535
    %v509 = vshra.s32 %v427, 16
    %v510 = vcvt.s32.f32 %v508
    %v511 = vcvt.s32.f32 %v509
    %512 = vmin.xlane.f32.xlu0 %v511
    %v513 = vpop.xlane.xlu0 %512
    %vm514 = vcmp.eq.f32.partialorder %v511, %v513
    %v515 = vsel %vm514, %v510, inf
    %516 = vmin.xlane.f32.xlu0 %v515
    %v517 = vpop.xlane.xlu0 %516
    %v518 = vcvt.f32.s32 %v517
    %v519 = vcvt.f32.s32 %v513
    %v520 = vshll.u32 %v519, 16
    %v521 = vadd.s32 %v520, %v518
    %v522 = vand.u32 %v428, 65535
    %v523 = vshra.s32 %v428, 16
    %v524 = vcvt.s32.f32 %v522
    %v525 = vcvt.s32.f32 %v523
    %526 = vmin.xlane.f32.xlu0 %v525
    %v527 = vpop.xlane.xlu0 %526
    %vm528 = vcmp.eq.f32.partialorder %v525, %v527
    %v529 = vsel %vm528, %v524, inf
    %530 = vmin.xlane.f32.xlu0 %v529
    %v531 = vpop.xlane.xlu0 %530
    %v532 = vcvt.f32.s32 %v531
    %v533 = vcvt.f32.s32 %v527
    %v534 = vshll.u32 %v533, 16
    %v535 = vadd.s32 %v534, %v532
    %v536 = vand.u32 %v429, 65535
    %v537 = vshra.s32 %v429, 16
    %v538 = vcvt.s32.f32 %v536
    %v539 = vcvt.s32.f32 %v537
    %540 = vmin.xlane.f32.xlu0 %v539
    %v541 = vpop.xlane.xlu0 %540
    %vm542 = vcmp.eq.f32.partialorder %v539, %v541
    %v543 = vsel %vm542, %v538, inf
    %544 = vmin.xlane.f32.xlu0 %v543
    %v545 = vpop.xlane.xlu0 %544
    %v546 = vcvt.f32.s32 %v545
    %v547 = vcvt.f32.s32 %v541
    %v548 = vshll.u32 %v547, 16
    %v549 = vadd.s32 %v548, %v546
    %v550 = vand.u32 %v430, 65535
    %v551 = vshra.s32 %v430, 16
    %v552 = vcvt.s32.f32 %v550
    %v553 = vcvt.s32.f32 %v551
    %554 = vmin.xlane.f32.xlu0 %v553
    %v555 = vpop.xlane.xlu0 %554
    %vm556 = vcmp.eq.f32.partialorder %v553, %v555
    %v557 = vsel %vm556, %v552, inf
    %558 = vmin.xlane.f32.xlu0 %v557
    %v559 = vpop.xlane.xlu0 %558
    %v560 = vcvt.f32.s32 %v559
    %v561 = vcvt.f32.s32 %v555
    %v562 = vshll.u32 %v561, 16
    %v563 = vadd.s32 %v562, %v560
    %v564 = vand.u32 %v431, 65535
    %v565 = vshra.s32 %v431, 16
    %v566 = vcvt.s32.f32 %v564
    %v567 = vcvt.s32.f32 %v565
    %568 = vmin.xlane.f32.xlu0 %v567
    %v569 = vpop.xlane.xlu0 %568
    %vm570 = vcmp.eq.f32.partialorder %v567, %v569
    %v571 = vsel %vm570, %v566, inf
    %572 = vmin.xlane.f32.xlu0 %v571
    %v573 = vpop.xlane.xlu0 %572
    %v574 = vcvt.f32.s32 %v573
    %v575 = vcvt.f32.s32 %v569
    %v576 = vshll.u32 %v575, 16
    %v577 = vadd.s32 %v576, %v574
    %v578 = vand.u32 %v432, 65535
    %v579 = vshra.s32 %v432, 16
    %v580 = vcvt.s32.f32 %v578
    %v581 = vcvt.s32.f32 %v579
    %582 = vmin.xlane.f32.xlu0 %v581
    %v583 = vpop.xlane.xlu0 %582
    %vm584 = vcmp.eq.f32.partialorder %v581, %v583
    %v585 = vsel %vm584, %v580, inf
    %586 = vmin.xlane.f32.xlu0 %v585
    %v587 = vpop.xlane.xlu0 %586
    %v588 = vcvt.f32.s32 %v587
    %v589 = vcvt.f32.s32 %v583
    %v590 = vshll.u32 %v589, 16
    %v591 = vadd.s32 %v590, %v588
    %v592 = vand.u32 %v433, 65535
    %v593 = vshra.s32 %v433, 16
    %v594 = vcvt.s32.f32 %v592
    %v595 = vcvt.s32.f32 %v593
    %596 = vmin.xlane.f32.xlu0 %v595
    %v597 = vpop.xlane.xlu0 %596
    %vm598 = vcmp.eq.f32.partialorder %v595, %v597
    %v599 = vsel %vm598, %v594, inf
    %600 = vmin.xlane.f32.xlu0 %v599
    %v601 = vpop.xlane.xlu0 %600
    %v602 = vcvt.f32.s32 %v601
    %v603 = vcvt.f32.s32 %v597
    %v604 = vshll.u32 %v603, 16
    %v605 = vadd.s32 %v604, %v602
    %v606 = vand.u32 %v434, 65535
    %v607 = vshra.s32 %v434, 16
    %v608 = vcvt.s32.f32 %v606
    %v609 = vcvt.s32.f32 %v607
    %610 = vmin.xlane.f32.xlu0 %v609
    %v611 = vpop.xlane.xlu0 %610
    %vm612 = vcmp.eq.f32.partialorder %v609, %v611
    %v613 = vsel %vm612, %v608, inf
    %614 = vmin.xlane.f32.xlu0 %v613
    %v615 = vpop.xlane.xlu0 %614
    %v616 = vcvt.f32.s32 %v615
    %v617 = vcvt.f32.s32 %v611
    %v618 = vshll.u32 %v617, 16
    %v619 = vadd.s32 %v618, %v616
    %v620 = vand.u32 %v435, 65535
    %v621 = vshra.s32 %v435, 16
    %v622 = vcvt.s32.f32 %v620
    %v623 = vcvt.s32.f32 %v621
    %624 = vmin.xlane.f32.xlu0 %v623
    %v625 = vpop.xlane.xlu0 %624
    %vm626 = vcmp.eq.f32.partialorder %v623, %v625
    %v627 = vsel %vm626, %v622, inf
    %628 = vmin.xlane.f32.xlu0 %v627
    %v629 = vpop.xlane.xlu0 %628
    %v630 = vcvt.f32.s32 %v629
    %v631 = vcvt.f32.s32 %v625
    %v632 = vshll.u32 %v631, 16
    %v633 = vadd.s32 %v632, %v630
    %v634 = vand.u32 %v436, 65535
    %v635 = vshra.s32 %v436, 16
    %v636 = vcvt.s32.f32 %v634
    %v637 = vcvt.s32.f32 %v635
    %638 = vmin.xlane.f32.xlu0 %v637
    %v639 = vpop.xlane.xlu0 %638
    %vm640 = vcmp.eq.f32.partialorder %v637, %v639
    %v641 = vsel %vm640, %v636, inf
    %642 = vmin.xlane.f32.xlu0 %v641
    %v643 = vpop.xlane.xlu0 %642
    %v644 = vcvt.f32.s32 %v643
    %v645 = vcvt.f32.s32 %v639
    %v646 = vshll.u32 %v645, 16
    %v647 = vadd.s32 %v646, %v644
    %v648 = vand.u32 %v437, 65535
    %v649 = vshra.s32 %v437, 16
    %v650 = vcvt.s32.f32 %v648
    %v651 = vcvt.s32.f32 %v649
    %652 = vmin.xlane.f32.xlu0 %v651
    %v653 = vpop.xlane.xlu0 %652
    %vm654 = vcmp.eq.f32.partialorder %v651, %v653
    %v655 = vsel %vm654, %v650, inf
    %656 = vmin.xlane.f32.xlu0 %v655
    %v657 = vpop.xlane.xlu0 %656
    %v658 = vcvt.f32.s32 %v657
    %v659 = vcvt.f32.s32 %v653
    %v660 = vshll.u32 %v659, 16
    %v661 = vadd.s32 %v660, %v658
    %vm662 = vcmp.eq.s32.totalorder %v321, %v451
    %vm663 = vcmp.eq.s32.totalorder %v321, %v465
    %vm664 = vcmp.eq.s32.totalorder %v321, %v479
    %vm665 = vcmp.eq.s32.totalorder %v321, %v493
    %vm666 = vcmp.eq.s32.totalorder %v321, %v507
    %vm667 = vcmp.eq.s32.totalorder %v321, %v521
    %vm668 = vcmp.eq.s32.totalorder %v321, %v535
    %vm669 = vcmp.eq.s32.totalorder %v321, %v549
    %vm670 = vcmp.eq.s32.totalorder %v321, %v563
    %vm671 = vcmp.eq.s32.totalorder %v321, %v577
    %vm672 = vcmp.eq.s32.totalorder %v321, %v591
    %vm673 = vcmp.eq.s32.totalorder %v321, %v605
    %vm674 = vcmp.eq.s32.totalorder %v321, %v619
    %vm675 = vcmp.eq.s32.totalorder %v321, %v633
    %vm676 = vcmp.eq.s32.totalorder %v321, %v647
    %vm677 = vcmp.eq.s32.totalorder %v321, %v661
    %v678 = vsel %vm662, 1, 0
    %v679 = vsel %vm663, 1, 0
    %v680 = vsel %vm664, 1, 0
    %v681 = vsel %vm665, 1, 0
    %v682 = vsel %vm666, 1, 0
    %v683 = vsel %vm667, 1, 0
    %v684 = vsel %vm668, 1, 0
    %v685 = vsel %vm669, 1, 0
    %v686 = vsel %vm670, 1, 0
    %v687 = vsel %vm671, 1, 0
    %v688 = vsel %vm672, 1, 0
    %v689 = vsel %vm673, 1, 0
    %v690 = vsel %vm674, 1, 0
    %v691 = vsel %vm675, 1, 0
    %v692 = vsel %vm676, 1, 0
    %v693 = vsel %vm677, 1, 0
    %v694 = vcvt.s32.f32 %v678
    %v695 = vcvt.s32.f32 %v679
    %v696 = vcvt.s32.f32 %v680
    %v697 = vcvt.s32.f32 %v681
    %v698 = vcvt.s32.f32 %v682
    %v699 = vcvt.s32.f32 %v683
    %v700 = vcvt.s32.f32 %v684
    %v701 = vcvt.s32.f32 %v685
    %v702 = vcvt.s32.f32 %v686
    %v703 = vcvt.s32.f32 %v687
    %v704 = vcvt.s32.f32 %v688
    %v705 = vcvt.s32.f32 %v689
    %v706 = vcvt.s32.f32 %v690
    %v707 = vcvt.s32.f32 %v691
    %v708 = vcvt.s32.f32 %v692
    %v709 = vcvt.s32.f32 %v693
    %v710 = vmul.f32 %v124, %v124
    %v711 = vmul.f32 %v125, %v125
    %v712 = vmul.f32 %v126, %v126
    %v713 = vmul.f32 %v127, %v127
    %v714 = vmul.f32 %v128, %v128
    %v715 = vmul.f32 %v129, %v129
    %v716 = vmul.f32 %v130, %v130
    %v717 = vmul.f32 %v131, %v131
    %v718 = vmul.f32 %v132, %v132
    %v719 = vmul.f32 %v133, %v133
    %v720 = vmul.f32 %v134, %v134
    %v721 = vmul.f32 %v135, %v135
    %v722 = vmul.f32 %v136, %v136
    %v723 = vmul.f32 %v137, %v137
    %v724 = vmul.f32 %v138, %v138
    %v725 = vmul.f32 %v139, %v139
    %726 = vadd.xlane.f32.xlu0 %v710
    %v727 = vpop.xlane.xlu0 %726
    %728 = vadd.xlane.f32.xlu0 %v711
    %v729 = vpop.xlane.xlu0 %728
    %730 = vadd.xlane.f32.xlu0 %v712
    %v731 = vpop.xlane.xlu0 %730
    %732 = vadd.xlane.f32.xlu0 %v713
    %v733 = vpop.xlane.xlu0 %732
    %734 = vadd.xlane.f32.xlu0 %v714
    %v735 = vpop.xlane.xlu0 %734
    %736 = vadd.xlane.f32.xlu0 %v715
    %v737 = vpop.xlane.xlu0 %736
    %738 = vadd.xlane.f32.xlu0 %v716
    %v739 = vpop.xlane.xlu0 %738
    %740 = vadd.xlane.f32.xlu0 %v717
    %v741 = vpop.xlane.xlu0 %740
    %742 = vadd.xlane.f32.xlu0 %v718
    %v743 = vpop.xlane.xlu0 %742
    %744 = vadd.xlane.f32.xlu0 %v719
    %v745 = vpop.xlane.xlu0 %744
    %746 = vadd.xlane.f32.xlu0 %v720
    %v747 = vpop.xlane.xlu0 %746
    %748 = vadd.xlane.f32.xlu0 %v721
    %v749 = vpop.xlane.xlu0 %748
    %750 = vadd.xlane.f32.xlu0 %v722
    %v751 = vpop.xlane.xlu0 %750
    %752 = vadd.xlane.f32.xlu0 %v723
    %v753 = vpop.xlane.xlu0 %752
    %754 = vadd.xlane.f32.xlu0 %v724
    %v755 = vpop.xlane.xlu0 %754
    %756 = vadd.xlane.f32.xlu0 %v725
    %v757 = vpop.xlane.xlu0 %756
    %758 = vadd.xlane.f32.xlu0 %v124
    %v759 = vpop.xlane.xlu0 %758
    %760 = vadd.xlane.f32.xlu0 %v125
    %v761 = vpop.xlane.xlu0 %760
    %762 = vadd.xlane.f32.xlu0 %v126
    %v763 = vpop.xlane.xlu0 %762
    %764 = vadd.xlane.f32.xlu0 %v127
    %v765 = vpop.xlane.xlu0 %764
    %766 = vadd.xlane.f32.xlu0 %v128
    %v767 = vpop.xlane.xlu0 %766
    %768 = vadd.xlane.f32.xlu0 %v129
    %v769 = vpop.xlane.xlu0 %768
    %770 = vadd.xlane.f32.xlu0 %v130
    %v771 = vpop.xlane.xlu0 %770
    %772 = vadd.xlane.f32.xlu0 %v131
    %v773 = vpop.xlane.xlu0 %772
    %774 = vadd.xlane.f32.xlu0 %v132
    %v775 = vpop.xlane.xlu0 %774
    %776 = vadd.xlane.f32.xlu0 %v133
    %v777 = vpop.xlane.xlu0 %776
    %778 = vadd.xlane.f32.xlu0 %v134
    %v779 = vpop.xlane.xlu0 %778
    %780 = vadd.xlane.f32.xlu0 %v135
    %v781 = vpop.xlane.xlu0 %780
    %782 = vadd.xlane.f32.xlu0 %v136
    %v783 = vpop.xlane.xlu0 %782
    %784 = vadd.xlane.f32.xlu0 %v137
    %v785 = vpop.xlane.xlu0 %784
    %786 = vadd.xlane.f32.xlu0 %v138
    %v787 = vpop.xlane.xlu0 %786
    %788 = vadd.xlane.f32.xlu0 %v139
    %v789 = vpop.xlane.xlu0 %788
    %vm790 = vcmask 7168
    %v791 = vsel %vm790, %v727, %v759
    %v792 = vsel %vm790, %v729, %v761
    %v793 = vsel %vm790, %v731, %v763
    %v794 = vsel %vm790, %v733, %v765
    %v795 = vsel %vm790, %v735, %v767
    %v796 = vsel %vm790, %v737, %v769
    %v797 = vsel %vm790, %v739, %v771
    %v798 = vsel %vm790, %v741, %v773
    %v799 = vsel %vm790, %v743, %v775
    %v800 = vsel %vm790, %v745, %v777
    %v801 = vsel %vm790, %v747, %v779
    %v802 = vsel %vm790, %v749, %v781
    %v803 = vsel %vm790, %v751, %v783
    %v804 = vsel %vm790, %v753, %v785
    %v805 = vsel %vm790, %v755, %v787
    %v806 = vsel %vm790, %v757, %v789
    %807 = vmatprep.subr.mxu0 0.0
    %808 = vmatpush1.msra.mxu0 %v791
    %809 = vmatprep.subr.mxu0 0.0
    %810 = vmatpush1.msra.mxu0 %v792
    %811 = vmatprep.subr.mxu0 0.0
    %812 = vmatpush1.msra.mxu0 %v793
    %813 = vmatprep.subr.mxu0 0.0
    %814 = vmatpush1.msra.mxu0 %v794
    %815 = vmatprep.subr.mxu0 0.0
    %816 = vmatpush1.msra.mxu0 %v795
    %817 = vmatprep.subr.mxu0 0.0
    %818 = vmatpush1.msra.mxu0 %v796
    %819 = vmatprep.subr.mxu0 0.0
    %820 = vmatpush1.msra.mxu0 %v797
    %821 = vmatprep.subr.mxu0 0.0
    %822 = vmatpush1.msra.mxu0 %v798
    %823 = vmatprep.subr.mxu0 0.0
    %824 = vmatpush1.msra.mxu0 %v799
    %825 = vmatprep.subr.mxu0 0.0
    %826 = vmatpush1.msra.mxu0 %v800
    %827 = vmatprep.subr.mxu0 0.0
    %828 = vmatpush1.msra.mxu0 %v801
    %829 = vmatprep.subr.mxu0 0.0
    %830 = vmatpush1.msra.mxu0 %v802
    %831 = vmatprep.subr.mxu0 0.0
    %832 = vmatpush1.msra.mxu0 %v803
    %833 = vmatprep.subr.mxu0 0.0
    %834 = vmatpush1.msra.mxu0 %v804
    %835 = vmatprep.subr.mxu0 0.0
    %836 = vmatpush1.msra.mxu0 %v805
    %837 = vmatprep.subr.mxu0 0.0
    %838 = vmatpush1.msra.mxu0 %v806
    %839 = vmatprep.subr.mxu0 0.0
    %840 = vmatpush1.msra.mxu0 0.0
    %841 = vmatprep.subr.mxu0 0.0
    %842 = vmatpush1.msra.mxu0 0.0
    %843 = vmatprep.subr.mxu0 0.0
    %844 = vmatpush1.msra.mxu0 0.0
    %845 = vmatprep.subr.mxu0 0.0
    %846 = vmatpush1.msra.mxu0 0.0
    %847 = vmatprep.subr.mxu0 0.0
    %848 = vmatpush1.msra.mxu0 0.0
    %849 = vmatprep.subr.mxu0 0.0
    %850 = vmatpush1.msra.mxu0 0.0
    %851 = vmatprep.subr.mxu0 0.0
    %852 = vmatpush1.msra.mxu0 0.0
    %853 = vmatprep.subr.mxu0 0.0
    %854 = vmatpush1.msra.mxu0 0.0
    %855 = vmatprep.subr.mxu0 0.0
    %856 = vmatpush1.msra.mxu0 0.0
    %857 = vmatprep.subr.mxu0 0.0
    %858 = vmatpush1.msra.mxu0 0.0
    %859 = vmatprep.subr.mxu0 0.0
    %860 = vmatpush1.msra.mxu0 0.0
    %861 = vmatprep.subr.mxu0 0.0
    %862 = vmatpush1.msra.mxu0 0.0
    %863 = vmatprep.subr.mxu0 0.0
    %864 = vmatpush1.msra.mxu0 0.0
    %865 = vmatprep.subr.mxu0 0.0
    %866 = vmatpush1.msra.mxu0 0.0
    %867 = vmatprep.subr.mxu0 0.0
    %868 = vmatpush1.msra.mxu0 0.0
    %869 = vmatprep.subr.mxu0 0.0
    %870 = vmatpush1.msra.mxu0 0.0
    %871 = vmatprep.mubr.f32.mxu0 0.0
    %872 = vmatmul.mubr.f32.gmra.mrb[0].mxu0 %v694
    %v873 = vpop.f32.mrb[0].mxu0
    %v874 = vadd.f32 0.0, %v873
    %v875 = vpop.f32.mrb[0].mxu0
    %876 = vmatprep.mubr.f32.mxu0 0.0
    %877 = vmatmul.mubr.f32.gmra.mrb[0].mxu0 %v695
    %v878 = vpop.f32.mrb[0].mxu0
    %v879 = vadd.f32 0.0, %v878
    %v880 = vpop.f32.mrb[0].mxu0
    %881 = vmatprep.mubr.f32.mxu0 0.0
    %882 = vmatmul.mubr.f32.gmra.mrb[0].mxu0 %v696
    %v883 = vpop.f32.mrb[0].mxu0
    %v884 = vadd.f32 0.0, %v883
    %v885 = vpop.f32.mrb[0].mxu0
    %886 = vmatprep.mubr.f32.mxu0 0.0
    %887 = vmatmul.mubr.f32.gmra.mrb[0].mxu0 %v697
    %v888 = vpop.f32.mrb[0].mxu0
    %v889 = vadd.f32 0.0, %v888
    %v890 = vpop.f32.mrb[0].mxu0
    %891 = vmatprep.mubr.f32.mxu0 0.0
    %892 = vmatmul.mubr.f32.gmra.mrb[0].mxu0 %v698
    %v893 = vpop.f32.mrb[0].mxu0
    %v894 = vadd.f32 0.0, %v893
    %v895 = vpop.f32.mrb[0].mxu0
    %896 = vmatprep.mubr.f32.mxu0 0.0
    %897 = vmatmul.mubr.f32.gmra.mrb[0].mxu0 %v699
    %v898 = vpop.f32.mrb[0].mxu0
    %v899 = vadd.f32 0.0, %v898
    %v900 = vpop.f32.mrb[0].mxu0
    %901 = vmatprep.mubr.f32.mxu0 0.0
    %902 = vmatmul.mubr.f32.gmra.mrb[0].mxu0 %v700
    %v903 = vpop.f32.mrb[0].mxu0
    %v904 = vadd.f32 0.0, %v903
    %v905 = vpop.f32.mrb[0].mxu0
    %906 = vmatprep.mubr.f32.mxu0 0.0
    %907 = vmatmul.mubr.f32.gmra.mrb[0].mxu0 %v701
    %v908 = vpop.f32.mrb[0].mxu0
    %v909 = vadd.f32 0.0, %v908
    %v910 = vpop.f32.mrb[0].mxu0
    %911 = vmatprep.mubr.f32.mxu0 0.0
    %912 = vmatmul.mubr.f32.gmra.mrb[0].mxu0 %v702
    %v913 = vpop.f32.mrb[0].mxu0
    %v914 = vadd.f32 0.0, %v913
    %v915 = vpop.f32.mrb[0].mxu0
    %916 = vmatprep.mubr.f32.mxu0 0.0
    %917 = vmatmul.mubr.f32.gmra.mrb[0].mxu0 %v703
    %v918 = vpop.f32.mrb[0].mxu0
    %v919 = vadd.f32 0.0, %v918
    %v920 = vpop.f32.mrb[0].mxu0
    %921 = vmatprep.mubr.f32.mxu0 0.0
    %922 = vmatmul.mubr.f32.gmra.mrb[0].mxu0 %v704
    %v923 = vpop.f32.mrb[0].mxu0
    %v924 = vadd.f32 0.0, %v923
    %v925 = vpop.f32.mrb[0].mxu0
    %926 = vmatprep.mubr.f32.mxu0 0.0
    %927 = vmatmul.mubr.f32.gmra.mrb[0].mxu0 %v705
    %v928 = vpop.f32.mrb[0].mxu0
    %v929 = vadd.f32 0.0, %v928
    %v930 = vpop.f32.mrb[0].mxu0
    %931 = vmatprep.mubr.f32.mxu0 0.0
    %932 = vmatmul.mubr.f32.gmra.mrb[0].mxu0 %v706
    %v933 = vpop.f32.mrb[0].mxu0
    %v934 = vadd.f32 0.0, %v933
    %v935 = vpop.f32.mrb[0].mxu0
    %936 = vmatprep.mubr.f32.mxu0 0.0
    %937 = vmatmul.mubr.f32.gmra.mrb[0].mxu0 %v707
    %v938 = vpop.f32.mrb[0].mxu0
    %v939 = vadd.f32 0.0, %v938
    %v940 = vpop.f32.mrb[0].mxu0
    %941 = vmatprep.mubr.f32.mxu0 0.0
    %942 = vmatmul.mubr.f32.gmra.mrb[0].mxu0 %v708
    %v943 = vpop.f32.mrb[0].mxu0
    %v944 = vadd.f32 0.0, %v943
    %v945 = vpop.f32.mrb[0].mxu0
    %946 = vmatprep.mubr.f32.mxu0 0.0
    %947 = vmatmul.mubr.f32.gmra.mrb[0].mxu0 %v709
    %v948 = vpop.f32.mrb[0].mxu0
    %v949 = vadd.f32 0.0, %v948
    %v950 = vpop.f32.mrb[0].mxu0
    %951 = vdwg.mxu0
    %v952 = vmul.f32 %v694, %v207
    %v953 = vmul.f32 %v695, %v212
    %v954 = vmul.f32 %v696, %v217
    %v955 = vmul.f32 %v697, %v222
    %v956 = vmul.f32 %v698, %v227
    %v957 = vmul.f32 %v699, %v232
    %v958 = vmul.f32 %v700, %v237
    %v959 = vmul.f32 %v701, %v242
    %v960 = vmul.f32 %v702, %v247
    %v961 = vmul.f32 %v703, %v252
    %v962 = vmul.f32 %v704, %v257
    %v963 = vmul.f32 %v705, %v262
    %v964 = vmul.f32 %v706, %v267
    %v965 = vmul.f32 %v707, %v272
    %v966 = vmul.f32 %v708, %v277
    %v967 = vmul.f32 %v709, %v282
    %968 = vadd.xlane.f32.xlu0 %v952
    %v969 = vpop.xlane.xlu0 %968
    %970 = vadd.xlane.f32.xlu0 %v953
    %v971 = vpop.xlane.xlu0 %970
    %972 = vadd.xlane.f32.xlu0 %v954
    %v973 = vpop.xlane.xlu0 %972
    %974 = vadd.xlane.f32.xlu0 %v955
    %v975 = vpop.xlane.xlu0 %974
    %976 = vadd.xlane.f32.xlu0 %v956
    %v977 = vpop.xlane.xlu0 %976
    %978 = vadd.xlane.f32.xlu0 %v957
    %v979 = vpop.xlane.xlu0 %978
    %980 = vadd.xlane.f32.xlu0 %v958
    %v981 = vpop.xlane.xlu0 %980
    %982 = vadd.xlane.f32.xlu0 %v959
    %v983 = vpop.xlane.xlu0 %982
    %984 = vadd.xlane.f32.xlu0 %v960
    %v985 = vpop.xlane.xlu0 %984
    %986 = vadd.xlane.f32.xlu0 %v961
    %v987 = vpop.xlane.xlu0 %986
    %988 = vadd.xlane.f32.xlu0 %v962
    %v989 = vpop.xlane.xlu0 %988
    %990 = vadd.xlane.f32.xlu0 %v963
    %v991 = vpop.xlane.xlu0 %990
    %992 = vadd.xlane.f32.xlu0 %v964
    %v993 = vpop.xlane.xlu0 %992
    %994 = vadd.xlane.f32.xlu0 %v965
    %v995 = vpop.xlane.xlu0 %994
    %996 = vadd.xlane.f32.xlu0 %v966
    %v997 = vpop.xlane.xlu0 %996
    %998 = vadd.xlane.f32.xlu0 %v967
    %v999 = vpop.xlane.xlu0 %998
    %v1000 = vld [vmem:[#allocation2] sm:$0xff]
    %v1001 = vld [vmem:[#allocation2 + $0x8] sm:$0xff]
    %v1002 = vld [vmem:[#allocation2 + $0x10] sm:$0xff]
    %v1003 = vld [vmem:[#allocation2 + $0x18] sm:$0xff]
    %v1004 = vld [vmem:[#allocation2 + $0x20] sm:$0xff]
    %v1005 = vld [vmem:[#allocation2 + $0x28] sm:$0xff]
    %v1006 = vld [vmem:[#allocation2 + $0x30] sm:$0xff]
    %v1007 = vld [vmem:[#allocation2 + $0x38] sm:$0xff]
    %v1008 = vld [vmem:[#allocation2 + $0x40] sm:$0xff]
    %v1009 = vld [vmem:[#allocation2 + $0x48] sm:$0xff]
    %v1010 = vld [vmem:[#allocation2 + $0x50] sm:$0xff]
    %v1011 = vld [vmem:[#allocation2 + $0x58] sm:$0xff]
    %v1012 = vld [vmem:[#allocation2 + $0x60] sm:$0xff]
    %v1013 = vld [vmem:[#allocation2 + $0x68] sm:$0xff]
    %v1014 = vld [vmem:[#allocation2 + $0x70] sm:$0xff]
    %v1015 = vld [vmem:[#allocation2 + $0x78] sm:$0xff]
    %vm1016 = vcmp.gt.f32.partialorder %v375, %v1000
    %vm1017 = vcmp.gt.f32.partialorder %v377, %v1001
    %vm1018 = vcmp.gt.f32.partialorder %v379, %v1002
    %vm1019 = vcmp.gt.f32.partialorder %v381, %v1003
    %vm1020 = vcmp.gt.f32.partialorder %v383, %v1004
    %vm1021 = vcmp.gt.f32.partialorder %v385, %v1005
    %vm1022 = vcmp.gt.f32.partialorder %v387, %v1006
    %vm1023 = vcmp.gt.f32.partialorder %v389, %v1007
    %vm1024 = vcmp.gt.f32.partialorder %v391, %v1008
    %vm1025 = vcmp.gt.f32.partialorder %v393, %v1009
    %vm1026 = vcmp.gt.f32.partialorder %v395, %v1010
    %vm1027 = vcmp.gt.f32.partialorder %v397, %v1011
    %vm1028 = vcmp.gt.f32.partialorder %v399, %v1012
    %vm1029 = vcmp.gt.f32.partialorder %v401, %v1013
    %vm1030 = vcmp.gt.f32.partialorder %v403, %v1014
    %vm1031 = vcmp.gt.f32.partialorder %v405, %v1015
    %v1032 = vld [vmem:[#allocation3] sm:$0xff]
    %v1033 = vld [vmem:[#allocation3 + $0x8] sm:$0xff]
    %v1034 = vld [vmem:[#allocation3 + $0x10] sm:$0xff]
    %v1035 = vld [vmem:[#allocation3 + $0x18] sm:$0xff]
    %v1036 = vld [vmem:[#allocation3 + $0x20] sm:$0xff]
    %v1037 = vld [vmem:[#allocation3 + $0x28] sm:$0xff]
    %v1038 = vld [vmem:[#allocation3 + $0x30] sm:$0xff]
    %v1039 = vld [vmem:[#allocation3 + $0x38] sm:$0xff]
    %v1040 = vld [vmem:[#allocation3 + $0x40] sm:$0xff]
    %v1041 = vld [vmem:[#allocation3 + $0x48] sm:$0xff]
    %v1042 = vld [vmem:[#allocation3 + $0x50] sm:$0xff]
    %v1043 = vld [vmem:[#allocation3 + $0x58] sm:$0xff]
    %v1044 = vld [vmem:[#allocation3 + $0x60] sm:$0xff]
    %v1045 = vld [vmem:[#allocation3 + $0x68] sm:$0xff]
    %v1046 = vld [vmem:[#allocation3 + $0x70] sm:$0xff]
    %v1047 = vld [vmem:[#allocation3 + $0x78] sm:$0xff]
    %v1048 = vsel %vm1016, %v969, %v1032
    %v1049 = vsel %vm1017, %v971, %v1033
    %v1050 = vsel %vm1018, %v973, %v1034
    %v1051 = vsel %vm1019, %v975, %v1035
    %v1052 = vsel %vm1020, %v977, %v1036
    %v1053 = vsel %vm1021, %v979, %v1037
    %v1054 = vsel %vm1022, %v981, %v1038
    %v1055 = vsel %vm1023, %v983, %v1039
    %v1056 = vsel %vm1024, %v985, %v1040
    %v1057 = vsel %vm1025, %v987, %v1041
    %v1058 = vsel %vm1026, %v989, %v1042
    %v1059 = vsel %vm1027, %v991, %v1043
    %v1060 = vsel %vm1028, %v993, %v1044
    %v1061 = vsel %vm1029, %v995, %v1045
    %v1062 = vsel %vm1030, %v997, %v1046
    %v1063 = vsel %vm1031, %v999, %v1047
    %1064 = vst.msk [vmem:[#allocation3] sm:$0xff] %vm790, %v1048
    %1065 = vst.msk [vmem:[#allocation3 + $0x8] sm:$0xff] %vm790, %v1049
    %1066 = vst.msk [vmem:[#allocation3 + $0x10] sm:$0xff] %vm790, %v1050
    %1067 = vst.msk [vmem:[#allocation3 + $0x18] sm:$0xff] %vm790, %v1051
    %1068 = vst.msk [vmem:[#allocation3 + $0x20] sm:$0xff] %vm790, %v1052
    %1069 = vst.msk [vmem:[#allocation3 + $0x28] sm:$0xff] %vm790, %v1053
    %1070 = vst.msk [vmem:[#allocation3 + $0x30] sm:$0xff] %vm790, %v1054
    %1071 = vst.msk [vmem:[#allocation3 + $0x38] sm:$0xff] %vm790, %v1055
    %1072 = vst.msk [vmem:[#allocation3 + $0x40] sm:$0xff] %vm790, %v1056
    %1073 = vst.msk [vmem:[#allocation3 + $0x48] sm:$0xff] %vm790, %v1057
    %1074 = vst.msk [vmem:[#allocation3 + $0x50] sm:$0xff] %vm790, %v1058
    %1075 = vst.msk [vmem:[#allocation3 + $0x58] sm:$0xff] %vm790, %v1059
    %1076 = vst.msk [vmem:[#allocation3 + $0x60] sm:$0xff] %vm790, %v1060
    %1077 = vst.msk [vmem:[#allocation3 + $0x68] sm:$0xff] %vm790, %v1061
    %1078 = vst.msk [vmem:[#allocation3 + $0x70] sm:$0xff] %vm790, %v1062
    %1079 = vst.msk [vmem:[#allocation3 + $0x78] sm:$0xff] %vm790, %v1063
    %v1080 = vld [vmem:[#allocation4] sm:$0xff]
    %v1081 = vld [vmem:[#allocation4 + $0x8] sm:$0xff]
    %v1082 = vld [vmem:[#allocation4 + $0x10] sm:$0xff]
    %v1083 = vld [vmem:[#allocation4 + $0x18] sm:$0xff]
    %v1084 = vld [vmem:[#allocation4 + $0x20] sm:$0xff]
    %v1085 = vld [vmem:[#allocation4 + $0x28] sm:$0xff]
    %v1086 = vld [vmem:[#allocation4 + $0x30] sm:$0xff]
    %v1087 = vld [vmem:[#allocation4 + $0x38] sm:$0xff]
    %v1088 = vld [vmem:[#allocation4 + $0x40] sm:$0xff]
    %v1089 = vld [vmem:[#allocation4 + $0x48] sm:$0xff]
    %v1090 = vld [vmem:[#allocation4 + $0x50] sm:$0xff]
    %v1091 = vld [vmem:[#allocation4 + $0x58] sm:$0xff]
    %v1092 = vld [vmem:[#allocation4 + $0x60] sm:$0xff]
    %v1093 = vld [vmem:[#allocation4 + $0x68] sm:$0xff]
    %v1094 = vld [vmem:[#allocation4 + $0x70] sm:$0xff]
    %v1095 = vld [vmem:[#allocation4 + $0x78] sm:$0xff]
    %v1096 = vsel %vm1016, %v874, %v1080
    %v1097 = vsel %vm1017, %v879, %v1081
    %v1098 = vsel %vm1018, %v884, %v1082
    %v1099 = vsel %vm1019, %v889, %v1083
    %v1100 = vsel %vm1020, %v894, %v1084
    %v1101 = vsel %vm1021, %v899, %v1085
    %v1102 = vsel %vm1022, %v904, %v1086
    %v1103 = vsel %vm1023, %v909, %v1087
    %v1104 = vsel %vm1024, %v914, %v1088
    %v1105 = vsel %vm1025, %v919, %v1089
    %v1106 = vsel %vm1026, %v924, %v1090
    %v1107 = vsel %vm1027, %v929, %v1091
    %v1108 = vsel %vm1028, %v934, %v1092
    %v1109 = vsel %vm1029, %v939, %v1093
    %v1110 = vsel %vm1030, %v944, %v1094
    %v1111 = vsel %vm1031, %v949, %v1095
    %1112 = vst.msk [vmem:[#allocation4] sm:$0xff] %vm790, %v1096
    %1113 = vst.msk [vmem:[#allocation4 + $0x8] sm:$0xff] %vm790, %v1097
    %1114 = vst.msk [vmem:[#allocation4 + $0x10] sm:$0xff] %vm790, %v1098
    %1115 = vst.msk [vmem:[#allocation4 + $0x18] sm:$0xff] %vm790, %v1099
    %1116 = vst.msk [vmem:[#allocation4 + $0x20] sm:$0xff] %vm790, %v1100
    %1117 = vst.msk [vmem:[#allocation4 + $0x28] sm:$0xff] %vm790, %v1101
    %1118 = vst.msk [vmem:[#allocation4 + $0x30] sm:$0xff] %vm790, %v1102
    %1119 = vst.msk [vmem:[#allocation4 + $0x38] sm:$0xff] %vm790, %v1103
    %1120 = vst.msk [vmem:[#allocation4 + $0x40] sm:$0xff] %vm790, %v1104
    %1121 = vst.msk [vmem:[#allocation4 + $0x48] sm:$0xff] %vm790, %v1105
    %1122 = vst.msk [vmem:[#allocation4 + $0x50] sm:$0xff] %vm790, %v1106
    %1123 = vst.msk [vmem:[#allocation4 + $0x58] sm:$0xff] %vm790, %v1107
    %1124 = vst.msk [vmem:[#allocation4 + $0x60] sm:$0xff] %vm790, %v1108
    %1125 = vst.msk [vmem:[#allocation4 + $0x68] sm:$0xff] %vm790, %v1109
    %1126 = vst.msk [vmem:[#allocation4 + $0x70] sm:$0xff] %vm790, %v1110
    %1127 = vst.msk [vmem:[#allocation4 + $0x78] sm:$0xff] %vm790, %v1111
    %v1128 = vld [vmem:[#allocation5] sm:$0xff]
    %v1129 = vld [vmem:[#allocation5 + $0x8] sm:$0xff]
    %v1130 = vld [vmem:[#allocation5 + $0x10] sm:$0xff]
    %v1131 = vld [vmem:[#allocation5 + $0x18] sm:$0xff]
    %v1132 = vld [vmem:[#allocation5 + $0x20] sm:$0xff]
    %v1133 = vld [vmem:[#allocation5 + $0x28] sm:$0xff]
    %v1134 = vld [vmem:[#allocation5 + $0x30] sm:$0xff]
    %v1135 = vld [vmem:[#allocation5 + $0x38] sm:$0xff]
    %v1136 = vld [vmem:[#allocation5 + $0x40] sm:$0xff]
    %v1137 = vld [vmem:[#allocation5 + $0x48] sm:$0xff]
    %v1138 = vld [vmem:[#allocation5 + $0x50] sm:$0xff]
    %v1139 = vld [vmem:[#allocation5 + $0x58] sm:$0xff]
    %v1140 = vld [vmem:[#allocation5 + $0x60] sm:$0xff]
    %v1141 = vld [vmem:[#allocation5 + $0x68] sm:$0xff]
    %v1142 = vld [vmem:[#allocation5 + $0x70] sm:$0xff]
    %v1143 = vld [vmem:[#allocation5 + $0x78] sm:$0xff]
    %1160 = vrot.lane.b32.xlu0 %v874, 127
    %v1161 = vpop.permute.xlu0 %1160
    %1162 = vrot.lane.b32.xlu0 %v879, 127
    %v1163 = vpop.permute.xlu0 %1162
    %1164 = vrot.lane.b32.xlu0 %v884, 127
    %v1165 = vpop.permute.xlu0 %1164
    %1166 = vrot.lane.b32.xlu0 %v889, 127
    %v1167 = vpop.permute.xlu0 %1166
    %1168 = vrot.lane.b32.xlu0 %v894, 127
    %v1169 = vpop.permute.xlu0 %1168
    %1170 = vrot.lane.b32.xlu0 %v899, 127
    %v1171 = vpop.permute.xlu0 %1170
    %1172 = vrot.lane.b32.xlu0 %v904, 127
    %v1173 = vpop.permute.xlu0 %1172
    %1174 = vrot.lane.b32.xlu0 %v909, 127
    %v1175 = vpop.permute.xlu0 %1174
    %1176 = vrot.lane.b32.xlu0 %v914, 127
    %v1177 = vpop.permute.xlu0 %1176
    %1178 = vrot.lane.b32.xlu0 %v919, 127
    %v1179 = vpop.permute.xlu0 %1178
    %1180 = vrot.lane.b32.xlu0 %v924, 127
    %v1181 = vpop.permute.xlu0 %1180
    %1182 = vrot.lane.b32.xlu0 %v929, 127
    %v1183 = vpop.permute.xlu0 %1182
    %1184 = vrot.lane.b32.xlu0 %v934, 127
    %v1185 = vpop.permute.xlu0 %1184
    %1186 = vrot.lane.b32.xlu0 %v939, 127
    %v1187 = vpop.permute.xlu0 %1186
    %1188 = vrot.lane.b32.xlu0 %v944, 127
    %v1189 = vpop.permute.xlu0 %1188
    %1190 = vrot.lane.b32.xlu0 %v949, 127
    %v1191 = vpop.permute.xlu0 %1190
    %v1208 = vsel %vm1016, %v1161, %v1128
    %v1209 = vsel %vm1017, %v1163, %v1129
    %v1210 = vsel %vm1018, %v1165, %v1130
    %v1211 = vsel %vm1019, %v1167, %v1131
    %v1212 = vsel %vm1020, %v1169, %v1132
    %v1213 = vsel %vm1021, %v1171, %v1133
    %v1214 = vsel %vm1022, %v1173, %v1134
    %v1215 = vsel %vm1023, %v1175, %v1135
    %v1216 = vsel %vm1024, %v1177, %v1136
    %v1217 = vsel %vm1025, %v1179, %v1137
    %v1218 = vsel %vm1026, %v1181, %v1138
    %v1219 = vsel %vm1027, %v1183, %v1139
    %v1220 = vsel %vm1028, %v1185, %v1140
    %v1221 = vsel %vm1029, %v1187, %v1141
    %v1222 = vsel %vm1030, %v1189, %v1142
    %v1223 = vsel %vm1031, %v1191, %v1143
    %1224 = vst.msk [vmem:[#allocation5] sm:$0xff] %vm790, %v1208
    %1225 = vst.msk [vmem:[#allocation5 + $0x8] sm:$0xff] %vm790, %v1209
    %1226 = vst.msk [vmem:[#allocation5 + $0x10] sm:$0xff] %vm790, %v1210
    %1227 = vst.msk [vmem:[#allocation5 + $0x18] sm:$0xff] %vm790, %v1211
    %1228 = vst.msk [vmem:[#allocation5 + $0x20] sm:$0xff] %vm790, %v1212
    %1229 = vst.msk [vmem:[#allocation5 + $0x28] sm:$0xff] %vm790, %v1213
    %1230 = vst.msk [vmem:[#allocation5 + $0x30] sm:$0xff] %vm790, %v1214
    %1231 = vst.msk [vmem:[#allocation5 + $0x38] sm:$0xff] %vm790, %v1215
    %1232 = vst.msk [vmem:[#allocation5 + $0x40] sm:$0xff] %vm790, %v1216
    %1233 = vst.msk [vmem:[#allocation5 + $0x48] sm:$0xff] %vm790, %v1217
    %1234 = vst.msk [vmem:[#allocation5 + $0x50] sm:$0xff] %vm790, %v1218
    %1235 = vst.msk [vmem:[#allocation5 + $0x58] sm:$0xff] %vm790, %v1219
    %1236 = vst.msk [vmem:[#allocation5 + $0x60] sm:$0xff] %vm790, %v1220
    %1237 = vst.msk [vmem:[#allocation5 + $0x68] sm:$0xff] %vm790, %v1221
    %1238 = vst.msk [vmem:[#allocation5 + $0x70] sm:$0xff] %vm790, %v1222
    %1239 = vst.msk [vmem:[#allocation5 + $0x78] sm:$0xff] %vm790, %v1223
    %v1240 = vld [vmem:[#allocation2] sm:$0xff]
    %v1241 = vld [vmem:[#allocation2 + $0x8] sm:$0xff]
    %v1242 = vld [vmem:[#allocation2 + $0x10] sm:$0xff]
    %v1243 = vld [vmem:[#allocation2 + $0x18] sm:$0xff]
    %v1244 = vld [vmem:[#allocation2 + $0x20] sm:$0xff]
    %v1245 = vld [vmem:[#allocation2 + $0x28] sm:$0xff]
    %v1246 = vld [vmem:[#allocation2 + $0x30] sm:$0xff]
    %v1247 = vld [vmem:[#allocation2 + $0x38] sm:$0xff]
    %v1248 = vld [vmem:[#allocation2 + $0x40] sm:$0xff]
    %v1249 = vld [vmem:[#allocation2 + $0x48] sm:$0xff]
    %v1250 = vld [vmem:[#allocation2 + $0x50] sm:$0xff]
    %v1251 = vld [vmem:[#allocation2 + $0x58] sm:$0xff]
    %v1252 = vld [vmem:[#allocation2 + $0x60] sm:$0xff]
    %v1253 = vld [vmem:[#allocation2 + $0x68] sm:$0xff]
    %v1254 = vld [vmem:[#allocation2 + $0x70] sm:$0xff]
    %v1255 = vld [vmem:[#allocation2 + $0x78] sm:$0xff]
    %v1256 = vsel %vm1016, %v375, %v1240
    %v1257 = vsel %vm1017, %v377, %v1241
    %v1258 = vsel %vm1018, %v379, %v1242
    %v1259 = vsel %vm1019, %v381, %v1243
    %v1260 = vsel %vm1020, %v383, %v1244
    %v1261 = vsel %vm1021, %v385, %v1245
    %v1262 = vsel %vm1022, %v387, %v1246
    %v1263 = vsel %vm1023, %v389, %v1247
    %v1264 = vsel %vm1024, %v391, %v1248
    %v1265 = vsel %vm1025, %v393, %v1249
    %v1266 = vsel %vm1026, %v395, %v1250
    %v1267 = vsel %vm1027, %v397, %v1251
    %v1268 = vsel %vm1028, %v399, %v1252
    %v1269 = vsel %vm1029, %v401, %v1253
    %v1270 = vsel %vm1030, %v403, %v1254
    %v1271 = vsel %vm1031, %v405, %v1255
    %1272 = vst.msk [vmem:[#allocation2] sm:$0xff] %vm790, %v1256
    %1273 = vst.msk [vmem:[#allocation2 + $0x8] sm:$0xff] %vm790, %v1257
    %1274 = vst.msk [vmem:[#allocation2 + $0x10] sm:$0xff] %vm790, %v1258
    %1275 = vst.msk [vmem:[#allocation2 + $0x18] sm:$0xff] %vm790, %v1259
    %1276 = vst.msk [vmem:[#allocation2 + $0x20] sm:$0xff] %vm790, %v1260
    %1277 = vst.msk [vmem:[#allocation2 + $0x28] sm:$0xff] %vm790, %v1261
    %1278 = vst.msk [vmem:[#allocation2 + $0x30] sm:$0xff] %vm790, %v1262
    %1279 = vst.msk [vmem:[#allocation2 + $0x38] sm:$0xff] %vm790, %v1263
    %1280 = vst.msk [vmem:[#allocation2 + $0x40] sm:$0xff] %vm790, %v1264
    %1281 = vst.msk [vmem:[#allocation2 + $0x48] sm:$0xff] %vm790, %v1265
    %1282 = vst.msk [vmem:[#allocation2 + $0x50] sm:$0xff] %vm790, %v1266
    %1283 = vst.msk [vmem:[#allocation2 + $0x58] sm:$0xff] %vm790, %v1267
    %1284 = vst.msk [vmem:[#allocation2 + $0x60] sm:$0xff] %vm790, %v1268
    %1285 = vst.msk [vmem:[#allocation2 + $0x68] sm:$0xff] %vm790, %v1269
    %1286 = vst.msk [vmem:[#allocation2 + $0x70] sm:$0xff] %vm790, %v1270
    %1287 = vst.msk [vmem:[#allocation2 + $0x78] sm:$0xff] %vm790, %v1271
    // Predicated region
    $region22: #{tpu_custom_call.1} parent=1 // pred_check
      %p1288 = pneg %p39
    $region23: #{tpu_custom_call.1} parent=1 // pred_check_branch
      %1290 = sbr.rel (%p1288) target = $region25
    $region24: #{tpu_custom_call.1} parent=1 // pred_region
      %v1291 = vmul.f32 %v108, %v108
      %v1292 = vmul.f32 %v109, %v109
      %v1293 = vmul.f32 %v110, %v110
      %v1294 = vmul.f32 %v111, %v111
      %v1295 = vmul.f32 %v112, %v112
      %v1296 = vmul.f32 %v113, %v113
      %v1297 = vmul.f32 %v114, %v114
      %v1298 = vmul.f32 %v115, %v115
      %v1299 = vmul.f32 %v116, %v116
      %v1300 = vmul.f32 %v117, %v117
      %v1301 = vmul.f32 %v118, %v118
      %v1302 = vmul.f32 %v119, %v119
      %v1303 = vmul.f32 %v120, %v120
      %v1304 = vmul.f32 %v121, %v121
      %v1305 = vmul.f32 %v122, %v122
      %v1306 = vmul.f32 %v123, %v123
      %1307 = vadd.xlane.f32.xlu0 %v1291
      %v1308 = vpop.xlane.xlu0 %1307
      %1309 = vadd.xlane.f32.xlu0 %v1292
      %v1310 = vpop.xlane.xlu0 %1309
      %1311 = vadd.xlane.f32.xlu0 %v1293
      %v1312 = vpop.xlane.xlu0 %1311
      %1313 = vadd.xlane.f32.xlu0 %v1294
      %v1314 = vpop.xlane.xlu0 %1313
      %1315 = vadd.xlane.f32.xlu0 %v1295
      %v1316 = vpop.xlane.xlu0 %1315
      %1317 = vadd.xlane.f32.xlu0 %v1296
      %v1318 = vpop.xlane.xlu0 %1317
      %1319 = vadd.xlane.f32.xlu0 %v1297
      %v1320 = vpop.xlane.xlu0 %1319
      %1321 = vadd.xlane.f32.xlu0 %v1298
      %v1322 = vpop.xlane.xlu0 %1321
      %1323 = vadd.xlane.f32.xlu0 %v1299
      %v1324 = vpop.xlane.xlu0 %1323
      %1325 = vadd.xlane.f32.xlu0 %v1300
      %v1326 = vpop.xlane.xlu0 %1325
      %1327 = vadd.xlane.f32.xlu0 %v1301
      %v1328 = vpop.xlane.xlu0 %1327
      %1329 = vadd.xlane.f32.xlu0 %v1302
      %v1330 = vpop.xlane.xlu0 %1329
      %1331 = vadd.xlane.f32.xlu0 %v1303
      %v1332 = vpop.xlane.xlu0 %1331
      %1333 = vadd.xlane.f32.xlu0 %v1304
      %v1334 = vpop.xlane.xlu0 %1333
      %1335 = vadd.xlane.f32.xlu0 %v1305
      %v1336 = vpop.xlane.xlu0 %1335
      %1337 = vadd.xlane.f32.xlu0 %v1306
      %v1338 = vpop.xlane.xlu0 %1337
      %1339 = vadd.xlane.f32.xlu0 %v108
      %v1340 = vpop.xlane.xlu0 %1339
      %1341 = vadd.xlane.f32.xlu0 %v109
      %v1342 = vpop.xlane.xlu0 %1341
      %1343 = vadd.xlane.f32.xlu0 %v110
      %v1344 = vpop.xlane.xlu0 %1343
      %1345 = vadd.xlane.f32.xlu0 %v111
      %v1346 = vpop.xlane.xlu0 %1345
      %1347 = vadd.xlane.f32.xlu0 %v112
      %v1348 = vpop.xlane.xlu0 %1347
      %1349 = vadd.xlane.f32.xlu0 %v113
      %v1350 = vpop.xlane.xlu0 %1349
      %1351 = vadd.xlane.f32.xlu0 %v114
      %v1352 = vpop.xlane.xlu0 %1351
      %1353 = vadd.xlane.f32.xlu0 %v115
      %v1354 = vpop.xlane.xlu0 %1353
      %1355 = vadd.xlane.f32.xlu0 %v116
      %v1356 = vpop.xlane.xlu0 %1355
      %1357 = vadd.xlane.f32.xlu0 %v117
      %v1358 = vpop.xlane.xlu0 %1357
      %1359 = vadd.xlane.f32.xlu0 %v118
      %v1360 = vpop.xlane.xlu0 %1359
      %1361 = vadd.xlane.f32.xlu0 %v119
      %v1362 = vpop.xlane.xlu0 %1361
      %1363 = vadd.xlane.f32.xlu0 %v120
      %v1364 = vpop.xlane.xlu0 %1363
      %1365 = vadd.xlane.f32.xlu0 %v121
      %v1366 = vpop.xlane.xlu0 %1365
      %1367 = vadd.xlane.f32.xlu0 %v122
      %v1368 = vpop.xlane.xlu0 %1367
      %1369 = vadd.xlane.f32.xlu0 %v123
      %v1370 = vpop.xlane.xlu0 %1369
      %v1371 = vld [vmem:[#allocation4] sm:$0xff]
      %v1372 = vld [vmem:[#allocation4 + $0x8] sm:$0xff]
      %v1373 = vld [vmem:[#allocation4 + $0x10] sm:$0xff]
      %v1374 = vld [vmem:[#allocation4 + $0x18] sm:$0xff]
      %v1375 = vld [vmem:[#allocation4 + $0x20] sm:$0xff]
      %v1376 = vld [vmem:[#allocation4 + $0x28] sm:$0xff]
      %v1377 = vld [vmem:[#allocation4 + $0x30] sm:$0xff]
      %v1378 = vld [vmem:[#allocation4 + $0x38] sm:$0xff]
      %v1379 = vld [vmem:[#allocation4 + $0x40] sm:$0xff]
      %v1380 = vld [vmem:[#allocation4 + $0x48] sm:$0xff]
      %v1381 = vld [vmem:[#allocation4 + $0x50] sm:$0xff]
      %v1382 = vld [vmem:[#allocation4 + $0x58] sm:$0xff]
      %v1383 = vld [vmem:[#allocation4 + $0x60] sm:$0xff]
      %v1384 = vld [vmem:[#allocation4 + $0x68] sm:$0xff]
      %v1385 = vld [vmem:[#allocation4 + $0x70] sm:$0xff]
      %v1386 = vld [vmem:[#allocation4 + $0x78] sm:$0xff]
      %v1387 = vadd.f32 %v1308, %v1371
      %v1388 = vadd.f32 %v1310, %v1372
      %v1389 = vadd.f32 %v1312, %v1373
      %v1390 = vadd.f32 %v1314, %v1374
      %v1391 = vadd.f32 %v1316, %v1375
      %v1392 = vadd.f32 %v1318, %v1376
      %v1393 = vadd.f32 %v1320, %v1377
      %v1394 = vadd.f32 %v1322, %v1378
      %v1395 = vadd.f32 %v1324, %v1379
      %v1396 = vadd.f32 %v1326, %v1380
      %v1397 = vadd.f32 %v1328, %v1381
      %v1398 = vadd.f32 %v1330, %v1382
      %v1399 = vadd.f32 %v1332, %v1383
      %v1400 = vadd.f32 %v1334, %v1384
      %v1401 = vadd.f32 %v1336, %v1385
      %v1402 = vadd.f32 %v1338, %v1386
      %v1403 = vld [vmem:[#allocation3] sm:$0xff]
      %v1404 = vld [vmem:[#allocation3 + $0x8] sm:$0xff]
      %v1405 = vld [vmem:[#allocation3 + $0x10] sm:$0xff]
      %v1406 = vld [vmem:[#allocation3 + $0x18] sm:$0xff]
      %v1407 = vld [vmem:[#allocation3 + $0x20] sm:$0xff]
      %v1408 = vld [vmem:[#allocation3 + $0x28] sm:$0xff]
      %v1409 = vld [vmem:[#allocation3 + $0x30] sm:$0xff]
      %v1410 = vld [vmem:[#allocation3 + $0x38] sm:$0xff]
      %v1411 = vld [vmem:[#allocation3 + $0x40] sm:$0xff]
      %v1412 = vld [vmem:[#allocation3 + $0x48] sm:$0xff]
      %v1413 = vld [vmem:[#allocation3 + $0x50] sm:$0xff]
      %v1414 = vld [vmem:[#allocation3 + $0x58] sm:$0xff]
      %v1415 = vld [vmem:[#allocation3 + $0x60] sm:$0xff]
      %v1416 = vld [vmem:[#allocation3 + $0x68] sm:$0xff]
      %v1417 = vld [vmem:[#allocation3 + $0x70] sm:$0xff]
      %v1418 = vld [vmem:[#allocation3 + $0x78] sm:$0xff]
      %v1419 = vmul.f32 %v1403, 2.0
      %v1420 = vmul.f32 %v1404, 2.0
      %v1421 = vmul.f32 %v1405, 2.0
      %v1422 = vmul.f32 %v1406, 2.0
      %v1423 = vmul.f32 %v1407, 2.0
      %v1424 = vmul.f32 %v1408, 2.0
      %v1425 = vmul.f32 %v1409, 2.0
      %v1426 = vmul.f32 %v1410, 2.0
      %v1427 = vmul.f32 %v1411, 2.0
      %v1428 = vmul.f32 %v1412, 2.0
      %v1429 = vmul.f32 %v1413, 2.0
      %v1430 = vmul.f32 %v1414, 2.0
      %v1431 = vmul.f32 %v1415, 2.0
      %v1432 = vmul.f32 %v1416, 2.0
      %v1433 = vmul.f32 %v1417, 2.0
      %v1434 = vmul.f32 %v1418, 2.0
      %v1435 = vsub.f32 %v1387, %v1419
      %v1436 = vsub.f32 %v1388, %v1420
      %v1437 = vsub.f32 %v1389, %v1421
      %v1438 = vsub.f32 %v1390, %v1422
      %v1439 = vsub.f32 %v1391, %v1423
      %v1440 = vsub.f32 %v1392, %v1424
      %v1441 = vsub.f32 %v1393, %v1425
      %v1442 = vsub.f32 %v1394, %v1426
      %v1443 = vsub.f32 %v1395, %v1427
      %v1444 = vsub.f32 %v1396, %v1428
      %v1445 = vsub.f32 %v1397, %v1429
      %v1446 = vsub.f32 %v1398, %v1430
      %v1447 = vsub.f32 %v1399, %v1431
      %v1448 = vsub.f32 %v1400, %v1432
      %v1449 = vsub.f32 %v1401, %v1433
      %v1450 = vsub.f32 %v1402, %v1434
      %v1451 = vld [vmem:[#allocation5] sm:$0xff]
      %v1452 = vld [vmem:[#allocation5 + $0x8] sm:$0xff]
      %v1453 = vld [vmem:[#allocation5 + $0x10] sm:$0xff]
      %v1454 = vld [vmem:[#allocation5 + $0x18] sm:$0xff]
      %v1455 = vld [vmem:[#allocation5 + $0x20] sm:$0xff]
      %v1456 = vld [vmem:[#allocation5 + $0x28] sm:$0xff]
      %v1457 = vld [vmem:[#allocation5 + $0x30] sm:$0xff]
      %v1458 = vld [vmem:[#allocation5 + $0x38] sm:$0xff]
      %v1459 = vld [vmem:[#allocation5 + $0x40] sm:$0xff]
      %v1460 = vld [vmem:[#allocation5 + $0x48] sm:$0xff]
      %v1461 = vld [vmem:[#allocation5 + $0x50] sm:$0xff]
      %v1462 = vld [vmem:[#allocation5 + $0x58] sm:$0xff]
      %v1463 = vld [vmem:[#allocation5 + $0x60] sm:$0xff]
      %v1464 = vld [vmem:[#allocation5 + $0x68] sm:$0xff]
      %v1465 = vld [vmem:[#allocation5 + $0x70] sm:$0xff]
      %v1466 = vld [vmem:[#allocation5 + $0x78] sm:$0xff]
      %v1467 = vsub.f32 %v1340, %v1451
      %v1468 = vsub.f32 %v1342, %v1452
      %v1469 = vsub.f32 %v1344, %v1453
      %v1470 = vsub.f32 %v1346, %v1454
      %v1471 = vsub.f32 %v1348, %v1455
      %v1472 = vsub.f32 %v1350, %v1456
      %v1473 = vsub.f32 %v1352, %v1457
      %v1474 = vsub.f32 %v1354, %v1458
      %v1475 = vsub.f32 %v1356, %v1459
      %v1476 = vsub.f32 %v1358, %v1460
      %v1477 = vsub.f32 %v1360, %v1461
      %v1478 = vsub.f32 %v1362, %v1462
      %v1479 = vsub.f32 %v1364, %v1463
      %v1480 = vsub.f32 %v1366, %v1464
      %v1481 = vsub.f32 %v1368, %v1465
      %v1482 = vsub.f32 %v1370, %v1466
      %v1483 = vmul.f32 %v1467, 2e-06
      %v1484 = vmul.f32 %v1468, 2e-06
      %v1485 = vmul.f32 %v1469, 2e-06
      %v1486 = vmul.f32 %v1470, 2e-06
      %v1487 = vmul.f32 %v1471, 2e-06
      %v1488 = vmul.f32 %v1472, 2e-06
      %v1489 = vmul.f32 %v1473, 2e-06
      %v1490 = vmul.f32 %v1474, 2e-06
      %v1491 = vmul.f32 %v1475, 2e-06
      %v1492 = vmul.f32 %v1476, 2e-06
      %v1493 = vmul.f32 %v1477, 2e-06
      %v1494 = vmul.f32 %v1478, 2e-06
      %v1495 = vmul.f32 %v1479, 2e-06
      %v1496 = vmul.f32 %v1480, 2e-06
      %v1497 = vmul.f32 %v1481, 2e-06
      %v1498 = vmul.f32 %v1482, 2e-06
      %v1499 = vadd.f32 %v1435, %v1483
      %v1500 = vadd.f32 %v1436, %v1484
      %v1501 = vadd.f32 %v1437, %v1485
      %v1502 = vadd.f32 %v1438, %v1486
      %v1503 = vadd.f32 %v1439, %v1487
      %v1504 = vadd.f32 %v1440, %v1488
      %v1505 = vadd.f32 %v1441, %v1489
      %v1506 = vadd.f32 %v1442, %v1490
      %v1507 = vadd.f32 %v1443, %v1491
      %v1508 = vadd.f32 %v1444, %v1492
      %v1509 = vadd.f32 %v1445, %v1493
      %v1510 = vadd.f32 %v1446, %v1494
      %v1511 = vadd.f32 %v1447, %v1495
      %v1512 = vadd.f32 %v1448, %v1496
      %v1513 = vadd.f32 %v1449, %v1497
      %v1514 = vadd.f32 %v1450, %v1498
      %v1515 = vadd.f32 %v1499, 3.2e-11
      %v1516 = vadd.f32 %v1500, 3.2e-11
      %v1517 = vadd.f32 %v1501, 3.2e-11
      %v1518 = vadd.f32 %v1502, 3.2e-11
      %v1519 = vadd.f32 %v1503, 3.2e-11
      %v1520 = vadd.f32 %v1504, 3.2e-11
      %v1521 = vadd.f32 %v1505, 3.2e-11
      %v1522 = vadd.f32 %v1506, 3.2e-11
      %v1523 = vadd.f32 %v1507, 3.2e-11
      %v1524 = vadd.f32 %v1508, 3.2e-11
      %v1525 = vadd.f32 %v1509, 3.2e-11
      %v1526 = vadd.f32 %v1510, 3.2e-11
      %v1527 = vadd.f32 %v1511, 3.2e-11
      %v1528 = vadd.f32 %v1512, 3.2e-11
      %v1529 = vadd.f32 %v1513, 3.2e-11
      %v1530 = vadd.f32 %v1514, 3.2e-11
      %v1531 = vmax.f32 %v1515, 1e-30
      %v1532 = vmax.f32 %v1516, 1e-30
      %v1533 = vmax.f32 %v1517, 1e-30
      %v1534 = vmax.f32 %v1518, 1e-30
      %v1535 = vmax.f32 %v1519, 1e-30
      %v1536 = vmax.f32 %v1520, 1e-30
      %v1537 = vmax.f32 %v1521, 1e-30
      %v1538 = vmax.f32 %v1522, 1e-30
      %v1539 = vmax.f32 %v1523, 1e-30
      %v1540 = vmax.f32 %v1524, 1e-30
      %v1541 = vmax.f32 %v1525, 1e-30
      %v1542 = vmax.f32 %v1526, 1e-30
      %v1543 = vmax.f32 %v1527, 1e-30
      %v1544 = vmax.f32 %v1528, 1e-30
      %v1545 = vmax.f32 %v1529, 1e-30
      %v1546 = vmax.f32 %v1530, 1e-30
      %v1547 = vlog2.pop %v1531
      %v1548 = vmul.f32 %v1547, 0.6931472
      %v1549 = vlog2.pop %v1532
      %v1550 = vmul.f32 %v1549, 0.6931472
      %v1551 = vlog2.pop %v1533
      %v1552 = vmul.f32 %v1551, 0.6931472
      %v1553 = vlog2.pop %v1534
      %v1554 = vmul.f32 %v1553, 0.6931472
      %v1555 = vlog2.pop %v1535
      %v1556 = vmul.f32 %v1555, 0.6931472
      %v1557 = vlog2.pop %v1536
      %v1558 = vmul.f32 %v1557, 0.6931472
      %v1559 = vlog2.pop %v1537
      %v1560 = vmul.f32 %v1559, 0.6931472
      %v1561 = vlog2.pop %v1538
      %v1562 = vmul.f32 %v1561, 0.6931472
      %v1563 = vlog2.pop %v1539
      %v1564 = vmul.f32 %v1563, 0.6931472
      %v1565 = vlog2.pop %v1540
      %v1566 = vmul.f32 %v1565, 0.6931472
      %v1567 = vlog2.pop %v1541
      %v1568 = vmul.f32 %v1567, 0.6931472
      %v1569 = vlog2.pop %v1542
      %v1570 = vmul.f32 %v1569, 0.6931472
      %v1571 = vlog2.pop %v1543
      %v1572 = vmul.f32 %v1571, 0.6931472
      %v1573 = vlog2.pop %v1544
      %v1574 = vmul.f32 %v1573, 0.6931472
      %v1575 = vlog2.pop %v1545
      %v1576 = vmul.f32 %v1575, 0.6931472
      %v1577 = vlog2.pop %v1546
      %v1578 = vmul.f32 %v1577, 0.6931472
      %v1579 = vmul.f32 %v1548, 0.5
      %v1580 = vmul.f32 %v1550, 0.5
      %v1581 = vmul.f32 %v1552, 0.5
      %v1582 = vmul.f32 %v1554, 0.5
      %v1583 = vmul.f32 %v1556, 0.5
      %v1584 = vmul.f32 %v1558, 0.5
      %v1585 = vmul.f32 %v1560, 0.5
      %v1586 = vmul.f32 %v1562, 0.5
      %v1587 = vmul.f32 %v1564, 0.5
      %v1588 = vmul.f32 %v1566, 0.5
      %v1589 = vmul.f32 %v1568, 0.5
      %v1590 = vmul.f32 %v1570, 0.5
      %v1591 = vmul.f32 %v1572, 0.5
      %v1592 = vmul.f32 %v1574, 0.5
      %v1593 = vmul.f32 %v1576, 0.5
      %v1594 = vmul.f32 %v1578, 0.5
      %v1595 = vadd.f32 %v1579, 2.7725887
      %v1596 = vadd.f32 %v1580, 2.7725887
      %v1597 = vadd.f32 %v1581, 2.7725887
      %v1598 = vadd.f32 %v1582, 2.7725887
      %v1599 = vadd.f32 %v1583, 2.7725887
      %v1600 = vadd.f32 %v1584, 2.7725887
      %v1601 = vadd.f32 %v1585, 2.7725887
      %v1602 = vadd.f32 %v1586, 2.7725887
      %v1603 = vadd.f32 %v1587, 2.7725887
      %v1604 = vadd.f32 %v1588, 2.7725887
      %v1605 = vadd.f32 %v1589, 2.7725887
      %v1606 = vadd.f32 %v1590, 2.7725887
      %v1607 = vadd.f32 %v1591, 2.7725887
      %v1608 = vadd.f32 %v1592, 2.7725887
      %v1609 = vadd.f32 %v1593, 2.7725887
      %v1610 = vadd.f32 %v1594, 2.7725887
      %vm1611 = vcmp.lt.s32.totalorder %v304, 16
      %vm1612 = vcmp.lt.s32.totalorder %v305, 16
      %vm1613 = vcmp.lt.s32.totalorder %v306, 16
      %vm1614 = vcmp.lt.s32.totalorder %v307, 16
      %vm1615 = vcmp.lt.s32.totalorder %v308, 16
      %vm1616 = vcmp.lt.s32.totalorder %v309, 16
      %vm1617 = vcmp.lt.s32.totalorder %v310, 16
      %vm1618 = vcmp.lt.s32.totalorder %v311, 16
      %vm1619 = vcmp.lt.s32.totalorder %v312, 16
      %vm1620 = vcmp.lt.s32.totalorder %v313, 16
      %vm1621 = vcmp.lt.s32.totalorder %v314, 16
      %vm1622 = vcmp.lt.s32.totalorder %v315, 16
      %vm1623 = vcmp.lt.s32.totalorder %v316, 16
      %vm1624 = vcmp.lt.s32.totalorder %v317, 16
      %vm1625 = vcmp.lt.s32.totalorder %v318, 16
      %vm1626 = vcmp.lt.s32.totalorder %v319, 16
      %v1627 = vsel %vm1611, %v1595, 0.0
      %v1628 = vsel %vm1612, %v1596, 0.0
      %v1629 = vsel %vm1613, %v1597, 0.0
      %v1630 = vsel %vm1614, %v1598, 0.0
      %v1631 = vsel %vm1615, %v1599, 0.0
      %v1632 = vsel %vm1616, %v1600, 0.0
      %v1633 = vsel %vm1617, %v1601, 0.0
      %v1634 = vsel %vm1618, %v1602, 0.0
      %v1635 = vsel %vm1619, %v1603, 0.0
      %v1636 = vsel %vm1620, %v1604, 0.0
      %v1637 = vsel %vm1621, %v1605, 0.0
      %v1638 = vsel %vm1622, %v1606, 0.0
      %v1639 = vsel %vm1623, %v1607, 0.0
      %v1640 = vsel %vm1624, %v1608, 0.0
      %v1641 = vsel %vm1625, %v1609, 0.0
      %v1642 = vsel %vm1626, %v1610, 0.0
      %1643 = vst.msk [vmem:[%s2] sm:$0xff] %vm790, %v1627
      %1644 = vst.msk [vmem:[%s2 + $0x8] sm:$0xff] %vm790, %v1628
      %1645 = vst.msk [vmem:[%s2 + $0x10] sm:$0xff] %vm790, %v1629
      %1646 = vst.msk [vmem:[%s2 + $0x18] sm:$0xff] %vm790, %v1630
      %1647 = vst.msk [vmem:[%s2 + $0x20] sm:$0xff] %vm790, %v1631
      %1648 = vst.msk [vmem:[%s2 + $0x28] sm:$0xff] %vm790, %v1632
      %1649 = vst.msk [vmem:[%s2 + $0x30] sm:$0xff] %vm790, %v1633
      %1650 = vst.msk [vmem:[%s2 + $0x38] sm:$0xff] %vm790, %v1634
      %1651 = vst.msk [vmem:[%s2 + $0x40] sm:$0xff] %vm790, %v1635
      %1652 = vst.msk [vmem:[%s2 + $0x48] sm:$0xff] %vm790, %v1636
      %1653 = vst.msk [vmem:[%s2 + $0x50] sm:$0xff] %vm790, %v1637
      %1654 = vst.msk [vmem:[%s2 + $0x58] sm:$0xff] %vm790, %v1638
      %1655 = vst.msk [vmem:[%s2 + $0x60] sm:$0xff] %vm790, %v1639
      %1656 = vst.msk [vmem:[%s2 + $0x68] sm:$0xff] %vm790, %v1640
      %1657 = vst.msk [vmem:[%s2 + $0x70] sm:$0xff] %vm790, %v1641
      %1658 = vst.msk [vmem:[%s2 + $0x78] sm:$0xff] %vm790, %v1642
    $region25: #{tpu_custom_call.1} parent=1 // pred_fallthru
      _
    // Predicated region
    $region26: #{tpu_custom_call.1} parent=1 // pred_check
      _
    $region27: #{tpu_custom_call.1} parent=1 // pred_check_branch
      %1660 = sbr.rel (0) target = $region29
    $region28: #{tpu_custom_call.1} parent=1 // pred_region
      _
    $region29: #{tpu_custom_call.1} parent=1 // pred_fallthru
      _
    // Predicated region
    $region30: #{tpu_custom_call.1} parent=1 // pred_check
      _
    $region31: #{tpu_custom_call.1} parent=1 // pred_check_branch
      %1662 = sbr.rel (0) target = $region33
    $region32: #{tpu_custom_call.1} parent=1 // pred_region
      _
    $region33: #{tpu_custom_call.1} parent=1 // pred_fallthru
      _
    %1663 = vsyncpa [#allocation7], 1
    %1664 = vsyncpa [#allocation9], 1

</llo_original>
